<compile_context>
chip_gen: v7x
topology: tpu7x:2x2x1
jax: 0.10.0
libtpu: 0.0.40
codegen_flags: <defaults>
</compile_context>

<pallas_src>
import jax
import jax.numpy as jnp
from jax import lax
from jax.experimental import pallas as pl
from jax.experimental.pallas import tpu as pltpu

_LANES = 128
_CHUNK_ROWS = 16            # register-blocked row chunk: (16,128) f32 = 2 vregs
_DEFAULT_TILE_ROWS = 2048   # (2048,128) f32 block = 1 MiB per buffer


def _cdiv(a, b):
    return -(-a // b)


def _round_up(a, b):
    return _cdiv(a, b) * b


def _fit_model_kernel(x_ref, w1_ref, b1_ref, w2_ref, b2_ref, w3_ref, b3_ref,
                      o_ref):
    """One batch tile of the 3-layer MLP, batch-in-lanes, all on the VPU.

    x_ref/o_ref: (TILE_ROWS, 128) f32 in VMEM (each element = one sample).
    w*/b* refs : tiny f32 arrays in SMEM; read once per tile as scalars.

    The tile is processed in (_CHUNK_ROWS, 128) chunks so h1 and the H layer-2
    accumulators stay register-resident (no VMEM round-trips for temporaries).
    """
    h = w1_ref.shape[0]                       # hidden width (static)
    tile_rows = x_ref.shape[0]                # static
    n_chunks = tile_rows // _CHUNK_ROWS       # static

    # Hoist the tiny scalar weight/bias reads out of the chunk loop; they are
    # loop-invariant (SMEM -> scalar regs once per grid step).
    w1 = [w1_ref[j] for j in range(h)]
    b1 = [b1_ref[j] for j in range(h)]
    w2 = [[w2_ref[j, k] for k in range(h)] for j in range(h)]
    b2 = [b2_ref[k] for k in range(h)]
    w3 = [w3_ref[k] for k in range(h)]
    b3 = b3_ref[0]

    def chunk_body(c, carry):
        r = pl.multiple_of(c * _CHUNK_ROWS, _CHUNK_ROWS)
        x = x_ref[pl.ds(r, _CHUNK_ROWS), :]            # (CHUNK, 128) f32

        # Layer 1 (+ReLU), streamed one hidden unit at a time; layer-2 partial
        # sums accumulate in `acc` (h register-resident (CHUNK,128) arrays).
        acc = [None] * h
        for j in range(h):
            h1_j = jnp.maximum(x * w1[j] + b1[j], 0.0)
            for k in range(h):
                term = h1_j * w2[j][k]                 # w2 is W2^T: [j][k]=W2[k,j]
                acc[k] = term if acc[k] is None else acc[k] + term

        # Layer 2 bias + ReLU, then layer 3 (length-H dot per sample).
        out = None
        for k in range(h):
            h2_k = jnp.maximum(acc[k] + b2[k], 0.0)
            term = h2_k * w3[k]
            out = term if out is None else out + term

        o_ref[pl.ds(r, _CHUNK_ROWS), :] = (out + b3).astype(o_ref.dtype)
        return carry

    lax.fori_loop(0, n_chunks, chunk_body, 0, unroll=False)


def _choose_tiling(rows, tile_rows):
    """Balanced row tiling: tile size multiple of _CHUNK_ROWS, minimal tail
    padding, and >=2 (even) grid steps once there is enough work so both v7x
    TensorCores get tiles."""
    tile_rows = max(_CHUNK_ROWS, _round_up(tile_rows, _CHUNK_ROWS))
    nt = max(1, _cdiv(rows, tile_rows))
    if rows >= 4 * _CHUNK_ROWS:          # enough work to split across 2 TCs
        nt = max(2, nt)
    if nt > 1 and nt % 2:
        nt += 1
    tr = _round_up(max(1, _cdiv(rows, nt)), _CHUNK_ROWS)
    return tr, nt


def fit_model_forward(x, params, tile_rows=_DEFAULT_TILE_ROWS):
    """x: (N, 1) (or (N,)) float32.  params: dict from init_params."""
    n = x.shape[0]
    h = params["w1"].shape[0]

    # Lane-dense repack: N samples -> (rows_pad, 128) slab, balanced row tiles.
    rows = max(1, _cdiv(n, _LANES))
    tr, num_tiles = _choose_tiling(rows, tile_rows)
    rows_pad = tr * num_tiles
    n_pad = rows_pad * _LANES

    xf = x.reshape(-1).astype(jnp.float32)
    if n_pad != n:
        xf = jnp.pad(xf, (0, n_pad - n))
    x2 = xf.reshape(rows_pad, _LANES)

    batch_spec = pl.BlockSpec((tr, _LANES), lambda i: (i, 0))
    smem_spec = pl.BlockSpec(memory_space=pltpu.MemorySpace.SMEM)

    # ~2*H*H + 6*H + 2 flops per sample; VALU-bound, not bandwidth-bound.
    flops_per_elem = 2 * h * h + 6 * h + 2
    cost = pl.CostEstimate(
        flops=int(n_pad * flops_per_elem),
        transcendentals=0,
        bytes_accessed=int(n_pad * 8 + 4 * (h * h + 4 * h + 1)),
    )

    out2 = pl.pallas_call(
        _fit_model_kernel,
        out_shape=jax.ShapeDtypeStruct((rows_pad, _LANES), jnp.float32),
        grid=(num_tiles,),
        in_specs=[batch_spec, smem_spec, smem_spec, smem_spec, smem_spec,
                  smem_spec, smem_spec],
        out_specs=batch_spec,
        compiler_params=pltpu.CompilerParams(
            dimension_semantics=("parallel",)),
        cost_estimate=cost,
    )(x2, params["w1"], params["b1"], params["w2t"], params["b2"],
      params["w3"], params["b3"])

    # TODO(synk): for very large N, fuse the pad/repack and the final slice
    # into the producer/consumer instead of separate XLA passes over x / out.
    return out2.reshape(-1)[:n].reshape(n, 1)


def init_params(key, num_units=10):
    """Deterministic init mimicking torch.nn.Linear's U(-1/sqrt(fan_in), ...)."""
    def linear(k, fan_in, fan_out):
        kw, kb = jax.random.split(k)
        bound = 1.0 / jnp.sqrt(jnp.float32(fan_in))
        w = jax.random.uniform(kw, (fan_out, fan_in), jnp.float32, -bound, bound)
        b = jax.random.uniform(kb, (fan_out,), jnp.float32, -bound, bound)
        return w, b

    k1, k2, k3 = jax.random.split(key, 3)
    w1, b1 = linear(k1, 1, num_units)            # (H, 1), (H,)
    w2, b2 = linear(k2, num_units, num_units)    # (H, H), (H,)
    w3, b3 = linear(k3, num_units, 1)            # (1, H), (1,)
    return {
        "w1": w1.reshape(-1),   # (H,)   column of Linear(1, H)
        "b1": b1,               # (H,)
        "w2t": w2.T,            # (H, H) so y[k] = sum_j x[j] * w2t[j, k]
        "b2": b2,               # (H,)
        "w3": w3.reshape(-1),   # (H,)   row of Linear(H, 1)
        "b3": b3,               # (1,)
    }


def reference_forward(x, p):
    """Plain-JAX reference for correctness checking."""
    h = jnp.maximum(x @ p["w1"][None, :] + p["b1"], 0.0)
    h = jnp.maximum(h @ p["w2t"] + p["b2"], 0.0)
    return h @ p["w3"][:, None] + p["b3"]


if __name__ == "__main__":
    key = jax.random.PRNGKey(0)
    k_params, k_x1, k_x2 = jax.random.split(key, 3)

    num_units = 10
    params = init_params(k_params, num_units=num_units)

    # Small batch, not a multiple of 128 -> exercises padding + single-tile path.
    batch_small = 300
    x_small = jax.random.normal(k_x1, (batch_small, 1), jnp.float32)
    out_small = jax.block_until_ready(fit_model_forward(x_small, params))
    ref_small = reference_forward(x_small, params)
    assert out_small.shape == (batch_small, 1), out_small.shape
    assert jnp.allclose(out_small, ref_small, atol=1e-5, rtol=1e-5), \
        "mismatch vs reference (small batch)"

    # Larger batch -> exercises the multi-tile (2 grid steps) + chunk-loop path.
    batch_big = 9000
    x_big = jax.random.normal(k_x2, (batch_big, 1), jnp.float32)
    out_big = jax.block_until_ready(fit_model_forward(x_big, params))
    ref_big = reference_forward(x_big, params)
    assert out_big.shape == (batch_big, 1), out_big.shape
    assert jnp.allclose(out_big, ref_big, atol=1e-5, rtol=1e-5), \
        "mismatch vs reference (big batch)"

    print("KERNEL_OK")
</pallas_src>

<mosaic_0001>
module attributes {stable_mosaic.version = 11 : i64} {
  func.func @_fit_model_kernel(%arg0: i32, %arg1: memref<16x128xf32, #tpu.memory_space<vmem>>, %arg2: memref<10xf32, #tpu.memory_space<smem>>, %arg3: memref<10xf32, #tpu.memory_space<smem>>, %arg4: memref<10x10xf32, #tpu.memory_space<smem>>, %arg5: memref<10xf32, #tpu.memory_space<smem>>, %arg6: memref<10xf32, #tpu.memory_space<smem>>, %arg7: memref<1xf32, #tpu.memory_space<smem>>, %arg8: memref<16x128xf32, #tpu.memory_space<vmem>>) attributes {dimension_semantics = [#tpu.dimension_semantics<parallel>], iteration_bounds = array<i64: 1>, scalar_prefetch = 0 : i64, scratch_operands = 0 : i64, tpu.core_type = #tpu.core_type<tc>, window_params = [{transform_indices = @transform_0, window_bounds = array<i64: 16, 128>}, {transform_indices = @transform_1, window_bounds = array<i64: 10>}, {transform_indices = @transform_2, window_bounds = array<i64: 10>}, {transform_indices = @transform_3, window_bounds = array<i64: 10, 10>}, {transform_indices = @transform_4, window_bounds = array<i64: 10>}, {transform_indices = @transform_5, window_bounds = array<i64: 10>}, {transform_indices = @transform_6, window_bounds = array<i64: 1>}, {transform_indices = @transform_7, window_bounds = array<i64: 16, 128>}]} {
    %c0 = arith.constant 0 : index
    %0 = memref.load %arg2[%c0] : memref<10xf32, #tpu.memory_space<smem>>
    %c1 = arith.constant 1 : index
    %1 = memref.load %arg2[%c1] : memref<10xf32, #tpu.memory_space<smem>>
    %c2 = arith.constant 2 : index
    %2 = memref.load %arg2[%c2] : memref<10xf32, #tpu.memory_space<smem>>
    %c3 = arith.constant 3 : index
    %3 = memref.load %arg2[%c3] : memref<10xf32, #tpu.memory_space<smem>>
    %c4 = arith.constant 4 : index
    %4 = memref.load %arg2[%c4] : memref<10xf32, #tpu.memory_space<smem>>
    %c5 = arith.constant 5 : index
    %5 = memref.load %arg2[%c5] : memref<10xf32, #tpu.memory_space<smem>>
    %c6 = arith.constant 6 : index
    %6 = memref.load %arg2[%c6] : memref<10xf32, #tpu.memory_space<smem>>
    %c7 = arith.constant 7 : index
    %7 = memref.load %arg2[%c7] : memref<10xf32, #tpu.memory_space<smem>>
    %c8 = arith.constant 8 : index
    %8 = memref.load %arg2[%c8] : memref<10xf32, #tpu.memory_space<smem>>
    %c9 = arith.constant 9 : index
    %9 = memref.load %arg2[%c9] : memref<10xf32, #tpu.memory_space<smem>>
    %c0_0 = arith.constant 0 : index
    %10 = memref.load %arg3[%c0_0] : memref<10xf32, #tpu.memory_space<smem>>
    %c1_1 = arith.constant 1 : index
    %11 = memref.load %arg3[%c1_1] : memref<10xf32, #tpu.memory_space<smem>>
    %c2_2 = arith.constant 2 : index
    %12 = memref.load %arg3[%c2_2] : memref<10xf32, #tpu.memory_space<smem>>
    %c3_3 = arith.constant 3 : index
    %13 = memref.load %arg3[%c3_3] : memref<10xf32, #tpu.memory_space<smem>>
    %c4_4 = arith.constant 4 : index
    %14 = memref.load %arg3[%c4_4] : memref<10xf32, #tpu.memory_space<smem>>
    %c5_5 = arith.constant 5 : index
    %15 = memref.load %arg3[%c5_5] : memref<10xf32, #tpu.memory_space<smem>>
    %c6_6 = arith.constant 6 : index
    %16 = memref.load %arg3[%c6_6] : memref<10xf32, #tpu.memory_space<smem>>
    %c7_7 = arith.constant 7 : index
    %17 = memref.load %arg3[%c7_7] : memref<10xf32, #tpu.memory_space<smem>>
    %c8_8 = arith.constant 8 : index
    %18 = memref.load %arg3[%c8_8] : memref<10xf32, #tpu.memory_space<smem>>
    %c9_9 = arith.constant 9 : index
    %19 = memref.load %arg3[%c9_9] : memref<10xf32, #tpu.memory_space<smem>>
    %c0_10 = arith.constant 0 : index
    %c0_11 = arith.constant 0 : index
    %20 = memref.load %arg4[%c0_10, %c0_11] : memref<10x10xf32, #tpu.memory_space<smem>>
    %c0_12 = arith.constant 0 : index
    %c1_13 = arith.constant 1 : index
    %21 = memref.load %arg4[%c0_12, %c1_13] : memref<10x10xf32, #tpu.memory_space<smem>>
    %c0_14 = arith.constant 0 : index
    %c2_15 = arith.constant 2 : index
    %22 = memref.load %arg4[%c0_14, %c2_15] : memref<10x10xf32, #tpu.memory_space<smem>>
    %c0_16 = arith.constant 0 : index
    %c3_17 = arith.constant 3 : index
    %23 = memref.load %arg4[%c0_16, %c3_17] : memref<10x10xf32, #tpu.memory_space<smem>>
    %c0_18 = arith.constant 0 : index
    %c4_19 = arith.constant 4 : index
    %24 = memref.load %arg4[%c0_18, %c4_19] : memref<10x10xf32, #tpu.memory_space<smem>>
    %c0_20 = arith.constant 0 : index
    %c5_21 = arith.constant 5 : index
    %25 = memref.load %arg4[%c0_20, %c5_21] : memref<10x10xf32, #tpu.memory_space<smem>>
    %c0_22 = arith.constant 0 : index
    %c6_23 = arith.constant 6 : index
    %26 = memref.load %arg4[%c0_22, %c6_23] : memref<10x10xf32, #tpu.memory_space<smem>>
    %c0_24 = arith.constant 0 : index
    %c7_25 = arith.constant 7 : index
    %27 = memref.load %arg4[%c0_24, %c7_25] : memref<10x10xf32, #tpu.memory_space<smem>>
    %c0_26 = arith.constant 0 : index
    %c8_27 = arith.constant 8 : index
    %28 = memref.load %arg4[%c0_26, %c8_27] : memref<10x10xf32, #tpu.memory_space<smem>>
    %c0_28 = arith.constant 0 : index
    %c9_29 = arith.constant 9 : index
    %29 = memref.load %arg4[%c0_28, %c9_29] : memref<10x10xf32, #tpu.memory_space<smem>>
    %c1_30 = arith.constant 1 : index
    %c0_31 = arith.constant 0 : index
    %30 = memref.load %arg4[%c1_30, %c0_31] : memref<10x10xf32, #tpu.memory_space<smem>>
    %c1_32 = arith.constant 1 : index
    %c1_33 = arith.constant 1 : index
    %31 = memref.load %arg4[%c1_32, %c1_33] : memref<10x10xf32, #tpu.memory_space<smem>>
    %c1_34 = arith.constant 1 : index
    %c2_35 = arith.constant 2 : index
    %32 = memref.load %arg4[%c1_34, %c2_35] : memref<10x10xf32, #tpu.memory_space<smem>>
    %c1_36 = arith.constant 1 : index
    %c3_37 = arith.constant 3 : index
    %33 = memref.load %arg4[%c1_36, %c3_37] : memref<10x10xf32, #tpu.memory_space<smem>>
    %c1_38 = arith.constant 1 : index
    %c4_39 = arith.constant 4 : index
    %34 = memref.load %arg4[%c1_38, %c4_39] : memref<10x10xf32, #tpu.memory_space<smem>>
    %c1_40 = arith.constant 1 : index
    %c5_41 = arith.constant 5 : index
    %35 = memref.load %arg4[%c1_40, %c5_41] : memref<10x10xf32, #tpu.memory_space<smem>>
    %c1_42 = arith.constant 1 : index
    %c6_43 = arith.constant 6 : index
    %36 = memref.load %arg4[%c1_42, %c6_43] : memref<10x10xf32, #tpu.memory_space<smem>>
    %c1_44 = arith.constant 1 : index
    %c7_45 = arith.constant 7 : index
    %37 = memref.load %arg4[%c1_44, %c7_45] : memref<10x10xf32, #tpu.memory_space<smem>>
    %c1_46 = arith.constant 1 : index
    %c8_47 = arith.constant 8 : index
    %38 = memref.load %arg4[%c1_46, %c8_47] : memref<10x10xf32, #tpu.memory_space<smem>>
    %c1_48 = arith.constant 1 : index
    %c9_49 = arith.constant 9 : index
    %39 = memref.load %arg4[%c1_48, %c9_49] : memref<10x10xf32, #tpu.memory_space<smem>>
    %c2_50 = arith.constant 2 : index
    %c0_51 = arith.constant 0 : index
    %40 = memref.load %arg4[%c2_50, %c0_51] : memref<10x10xf32, #tpu.memory_space<smem>>
    %c2_52 = arith.constant 2 : index
    %c1_53 = arith.constant 1 : index
    %41 = memref.load %arg4[%c2_52, %c1_53] : memref<10x10xf32, #tpu.memory_space<smem>>
    %c2_54 = arith.constant 2 : index
    %c2_55 = arith.constant 2 : index
    %42 = memref.load %arg4[%c2_54, %c2_55] : memref<10x10xf32, #tpu.memory_space<smem>>
    %c2_56 = arith.constant 2 : index
    %c3_57 = arith.constant 3 : index
    %43 = memref.load %arg4[%c2_56, %c3_57] : memref<10x10xf32, #tpu.memory_space<smem>>
    %c2_58 = arith.constant 2 : index
    %c4_59 = arith.constant 4 : index
    %44 = memref.load %arg4[%c2_58, %c4_59] : memref<10x10xf32, #tpu.memory_space<smem>>
    %c2_60 = arith.constant 2 : index
    %c5_61 = arith.constant 5 : index
    %45 = memref.load %arg4[%c2_60, %c5_61] : memref<10x10xf32, #tpu.memory_space<smem>>
    %c2_62 = arith.constant 2 : index
    %c6_63 = arith.constant 6 : index
    %46 = memref.load %arg4[%c2_62, %c6_63] : memref<10x10xf32, #tpu.memory_space<smem>>
    %c2_64 = arith.constant 2 : index
    %c7_65 = arith.constant 7 : index
    %47 = memref.load %arg4[%c2_64, %c7_65] : memref<10x10xf32, #tpu.memory_space<smem>>
    %c2_66 = arith.constant 2 : index
    %c8_67 = arith.constant 8 : index
    %48 = memref.load %arg4[%c2_66, %c8_67] : memref<10x10xf32, #tpu.memory_space<smem>>
    %c2_68 = arith.constant 2 : index
    %c9_69 = arith.constant 9 : index
    %49 = memref.load %arg4[%c2_68, %c9_69] : memref<10x10xf32, #tpu.memory_space<smem>>
    %c3_70 = arith.constant 3 : index
    %c0_71 = arith.constant 0 : index
    %50 = memref.load %arg4[%c3_70, %c0_71] : memref<10x10xf32, #tpu.memory_space<smem>>
    %c3_72 = arith.constant 3 : index
    %c1_73 = arith.constant 1 : index
    %51 = memref.load %arg4[%c3_72, %c1_73] : memref<10x10xf32, #tpu.memory_space<smem>>
    %c3_74 = arith.constant 3 : index
    %c2_75 = arith.constant 2 : index
    %52 = memref.load %arg4[%c3_74, %c2_75] : memref<10x10xf32, #tpu.memory_space<smem>>
    %c3_76 = arith.constant 3 : index
    %c3_77 = arith.constant 3 : index
    %53 = memref.load %arg4[%c3_76, %c3_77] : memref<10x10xf32, #tpu.memory_space<smem>>
    %c3_78 = arith.constant 3 : index
    %c4_79 = arith.constant 4 : index
    %54 = memref.load %arg4[%c3_78, %c4_79] : memref<10x10xf32, #tpu.memory_space<smem>>
    %c3_80 = arith.constant 3 : index
    %c5_81 = arith.constant 5 : index
    %55 = memref.load %arg4[%c3_80, %c5_81] : memref<10x10xf32, #tpu.memory_space<smem>>
    %c3_82 = arith.constant 3 : index
    %c6_83 = arith.constant 6 : index
    %56 = memref.load %arg4[%c3_82, %c6_83] : memref<10x10xf32, #tpu.memory_space<smem>>
    %c3_84 = arith.constant 3 : index
    %c7_85 = arith.constant 7 : index
    %57 = memref.load %arg4[%c3_84, %c7_85] : memref<10x10xf32, #tpu.memory_space<smem>>
    %c3_86 = arith.constant 3 : index
    %c8_87 = arith.constant 8 : index
    %58 = memref.load %arg4[%c3_86, %c8_87] : memref<10x10xf32, #tpu.memory_space<smem>>
    %c3_88 = arith.constant 3 : index
    %c9_89 = arith.constant 9 : index
    %59 = memref.load %arg4[%c3_88, %c9_89] : memref<10x10xf32, #tpu.memory_space<smem>>
    %c4_90 = arith.constant 4 : index
    %c0_91 = arith.constant 0 : index
    %60 = memref.load %arg4[%c4_90, %c0_91] : memref<10x10xf32, #tpu.memory_space<smem>>
    %c4_92 = arith.constant 4 : index
    %c1_93 = arith.constant 1 : index
    %61 = memref.load %arg4[%c4_92, %c1_93] : memref<10x10xf32, #tpu.memory_space<smem>>
    %c4_94 = arith.constant 4 : index
    %c2_95 = arith.constant 2 : index
    %62 = memref.load %arg4[%c4_94, %c2_95] : memref<10x10xf32, #tpu.memory_space<smem>>
    %c4_96 = arith.constant 4 : index
    %c3_97 = arith.constant 3 : index
    %63 = memref.load %arg4[%c4_96, %c3_97] : memref<10x10xf32, #tpu.memory_space<smem>>
    %c4_98 = arith.constant 4 : index
    %c4_99 = arith.constant 4 : index
    %64 = memref.load %arg4[%c4_98, %c4_99] : memref<10x10xf32, #tpu.memory_space<smem>>
    %c4_100 = arith.constant 4 : index
    %c5_101 = arith.constant 5 : index
    %65 = memref.load %arg4[%c4_100, %c5_101] : memref<10x10xf32, #tpu.memory_space<smem>>
    %c4_102 = arith.constant 4 : index
    %c6_103 = arith.constant 6 : index
    %66 = memref.load %arg4[%c4_102, %c6_103] : memref<10x10xf32, #tpu.memory_space<smem>>
    %c4_104 = arith.constant 4 : index
    %c7_105 = arith.constant 7 : index
    %67 = memref.load %arg4[%c4_104, %c7_105] : memref<10x10xf32, #tpu.memory_space<smem>>
    %c4_106 = arith.constant 4 : index
    %c8_107 = arith.constant 8 : index
    %68 = memref.load %arg4[%c4_106, %c8_107] : memref<10x10xf32, #tpu.memory_space<smem>>
    %c4_108 = arith.constant 4 : index
    %c9_109 = arith.constant 9 : index
    %69 = memref.load %arg4[%c4_108, %c9_109] : memref<10x10xf32, #tpu.memory_space<smem>>
    %c5_110 = arith.constant 5 : index
    %c0_111 = arith.constant 0 : index
    %70 = memref.load %arg4[%c5_110, %c0_111] : memref<10x10xf32, #tpu.memory_space<smem>>
    %c5_112 = arith.constant 5 : index
    %c1_113 = arith.constant 1 : index
    %71 = memref.load %arg4[%c5_112, %c1_113] : memref<10x10xf32, #tpu.memory_space<smem>>
    %c5_114 = arith.constant 5 : index
    %c2_115 = arith.constant 2 : index
    %72 = memref.load %arg4[%c5_114, %c2_115] : memref<10x10xf32, #tpu.memory_space<smem>>
    %c5_116 = arith.constant 5 : index
    %c3_117 = arith.constant 3 : index
    %73 = memref.load %arg4[%c5_116, %c3_117] : memref<10x10xf32, #tpu.memory_space<smem>>
    %c5_118 = arith.constant 5 : index
    %c4_119 = arith.constant 4 : index
    %74 = memref.load %arg4[%c5_118, %c4_119] : memref<10x10xf32, #tpu.memory_space<smem>>
    %c5_120 = arith.constant 5 : index
    %c5_121 = arith.constant 5 : index
    %75 = memref.load %arg4[%c5_120, %c5_121] : memref<10x10xf32, #tpu.memory_space<smem>>
    %c5_122 = arith.constant 5 : index
    %c6_123 = arith.constant 6 : index
    %76 = memref.load %arg4[%c5_122, %c6_123] : memref<10x10xf32, #tpu.memory_space<smem>>
    %c5_124 = arith.constant 5 : index
    %c7_125 = arith.constant 7 : index
    %77 = memref.load %arg4[%c5_124, %c7_125] : memref<10x10xf32, #tpu.memory_space<smem>>
    %c5_126 = arith.constant 5 : index
    %c8_127 = arith.constant 8 : index
    %78 = memref.load %arg4[%c5_126, %c8_127] : memref<10x10xf32, #tpu.memory_space<smem>>
    %c5_128 = arith.constant 5 : index
    %c9_129 = arith.constant 9 : index
    %79 = memref.load %arg4[%c5_128, %c9_129] : memref<10x10xf32, #tpu.memory_space<smem>>
    %c6_130 = arith.constant 6 : index
    %c0_131 = arith.constant 0 : index
    %80 = memref.load %arg4[%c6_130, %c0_131] : memref<10x10xf32, #tpu.memory_space<smem>>
    %c6_132 = arith.constant 6 : index
    %c1_133 = arith.constant 1 : index
    %81 = memref.load %arg4[%c6_132, %c1_133] : memref<10x10xf32, #tpu.memory_space<smem>>
    %c6_134 = arith.constant 6 : index
    %c2_135 = arith.constant 2 : index
    %82 = memref.load %arg4[%c6_134, %c2_135] : memref<10x10xf32, #tpu.memory_space<smem>>
    %c6_136 = arith.constant 6 : index
    %c3_137 = arith.constant 3 : index
    %83 = memref.load %arg4[%c6_136, %c3_137] : memref<10x10xf32, #tpu.memory_space<smem>>
    %c6_138 = arith.constant 6 : index
    %c4_139 = arith.constant 4 : index
    %84 = memref.load %arg4[%c6_138, %c4_139] : memref<10x10xf32, #tpu.memory_space<smem>>
    %c6_140 = arith.constant 6 : index
    %c5_141 = arith.constant 5 : index
    %85 = memref.load %arg4[%c6_140, %c5_141] : memref<10x10xf32, #tpu.memory_space<smem>>
    %c6_142 = arith.constant 6 : index
    %c6_143 = arith.constant 6 : index
    %86 = memref.load %arg4[%c6_142, %c6_143] : memref<10x10xf32, #tpu.memory_space<smem>>
    %c6_144 = arith.constant 6 : index
    %c7_145 = arith.constant 7 : index
    %87 = memref.load %arg4[%c6_144, %c7_145] : memref<10x10xf32, #tpu.memory_space<smem>>
    %c6_146 = arith.constant 6 : index
    %c8_147 = arith.constant 8 : index
    %88 = memref.load %arg4[%c6_146, %c8_147] : memref<10x10xf32, #tpu.memory_space<smem>>
    %c6_148 = arith.constant 6 : index
    %c9_149 = arith.constant 9 : index
    %89 = memref.load %arg4[%c6_148, %c9_149] : memref<10x10xf32, #tpu.memory_space<smem>>
    %c7_150 = arith.constant 7 : index
    %c0_151 = arith.constant 0 : index
    %90 = memref.load %arg4[%c7_150, %c0_151] : memref<10x10xf32, #tpu.memory_space<smem>>
    %c7_152 = arith.constant 7 : index
    %c1_153 = arith.constant 1 : index
    %91 = memref.load %arg4[%c7_152, %c1_153] : memref<10x10xf32, #tpu.memory_space<smem>>
    %c7_154 = arith.constant 7 : index
    %c2_155 = arith.constant 2 : index
    %92 = memref.load %arg4[%c7_154, %c2_155] : memref<10x10xf32, #tpu.memory_space<smem>>
    %c7_156 = arith.constant 7 : index
    %c3_157 = arith.constant 3 : index
    %93 = memref.load %arg4[%c7_156, %c3_157] : memref<10x10xf32, #tpu.memory_space<smem>>
    %c7_158 = arith.constant 7 : index
    %c4_159 = arith.constant 4 : index
    %94 = memref.load %arg4[%c7_158, %c4_159] : memref<10x10xf32, #tpu.memory_space<smem>>
    %c7_160 = arith.constant 7 : index
    %c5_161 = arith.constant 5 : index
    %95 = memref.load %arg4[%c7_160, %c5_161] : memref<10x10xf32, #tpu.memory_space<smem>>
    %c7_162 = arith.constant 7 : index
    %c6_163 = arith.constant 6 : index
    %96 = memref.load %arg4[%c7_162, %c6_163] : memref<10x10xf32, #tpu.memory_space<smem>>
    %c7_164 = arith.constant 7 : index
    %c7_165 = arith.constant 7 : index
    %97 = memref.load %arg4[%c7_164, %c7_165] : memref<10x10xf32, #tpu.memory_space<smem>>
    %c7_166 = arith.constant 7 : index
    %c8_167 = arith.constant 8 : index
    %98 = memref.load %arg4[%c7_166, %c8_167] : memref<10x10xf32, #tpu.memory_space<smem>>
    %c7_168 = arith.constant 7 : index
    %c9_169 = arith.constant 9 : index
    %99 = memref.load %arg4[%c7_168, %c9_169] : memref<10x10xf32, #tpu.memory_space<smem>>
    %c8_170 = arith.constant 8 : index
    %c0_171 = arith.constant 0 : index
    %100 = memref.load %arg4[%c8_170, %c0_171] : memref<10x10xf32, #tpu.memory_space<smem>>
    %c8_172 = arith.constant 8 : index
    %c1_173 = arith.constant 1 : index
    %101 = memref.load %arg4[%c8_172, %c1_173] : memref<10x10xf32, #tpu.memory_space<smem>>
    %c8_174 = arith.constant 8 : index
    %c2_175 = arith.constant 2 : index
    %102 = memref.load %arg4[%c8_174, %c2_175] : memref<10x10xf32, #tpu.memory_space<smem>>
    %c8_176 = arith.constant 8 : index
    %c3_177 = arith.constant 3 : index
    %103 = memref.load %arg4[%c8_176, %c3_177] : memref<10x10xf32, #tpu.memory_space<smem>>
    %c8_178 = arith.constant 8 : index
    %c4_179 = arith.constant 4 : index
    %104 = memref.load %arg4[%c8_178, %c4_179] : memref<10x10xf32, #tpu.memory_space<smem>>
    %c8_180 = arith.constant 8 : index
    %c5_181 = arith.constant 5 : index
    %105 = memref.load %arg4[%c8_180, %c5_181] : memref<10x10xf32, #tpu.memory_space<smem>>
    %c8_182 = arith.constant 8 : index
    %c6_183 = arith.constant 6 : index
    %106 = memref.load %arg4[%c8_182, %c6_183] : memref<10x10xf32, #tpu.memory_space<smem>>
    %c8_184 = arith.constant 8 : index
    %c7_185 = arith.constant 7 : index
    %107 = memref.load %arg4[%c8_184, %c7_185] : memref<10x10xf32, #tpu.memory_space<smem>>
    %c8_186 = arith.constant 8 : index
    %c8_187 = arith.constant 8 : index
    %108 = memref.load %arg4[%c8_186, %c8_187] : memref<10x10xf32, #tpu.memory_space<smem>>
    %c8_188 = arith.constant 8 : index
    %c9_189 = arith.constant 9 : index
    %109 = memref.load %arg4[%c8_188, %c9_189] : memref<10x10xf32, #tpu.memory_space<smem>>
    %c9_190 = arith.constant 9 : index
    %c0_191 = arith.constant 0 : index
    %110 = memref.load %arg4[%c9_190, %c0_191] : memref<10x10xf32, #tpu.memory_space<smem>>
    %c9_192 = arith.constant 9 : index
    %c1_193 = arith.constant 1 : index
    %111 = memref.load %arg4[%c9_192, %c1_193] : memref<10x10xf32, #tpu.memory_space<smem>>
    %c9_194 = arith.constant 9 : index
    %c2_195 = arith.constant 2 : index
    %112 = memref.load %arg4[%c9_194, %c2_195] : memref<10x10xf32, #tpu.memory_space<smem>>
    %c9_196 = arith.constant 9 : index
    %c3_197 = arith.constant 3 : index
    %113 = memref.load %arg4[%c9_196, %c3_197] : memref<10x10xf32, #tpu.memory_space<smem>>
    %c9_198 = arith.constant 9 : index
    %c4_199 = arith.constant 4 : index
    %114 = memref.load %arg4[%c9_198, %c4_199] : memref<10x10xf32, #tpu.memory_space<smem>>
    %c9_200 = arith.constant 9 : index
    %c5_201 = arith.constant 5 : index
    %115 = memref.load %arg4[%c9_200, %c5_201] : memref<10x10xf32, #tpu.memory_space<smem>>
    %c9_202 = arith.constant 9 : index
    %c6_203 = arith.constant 6 : index
    %116 = memref.load %arg4[%c9_202, %c6_203] : memref<10x10xf32, #tpu.memory_space<smem>>
    %c9_204 = arith.constant 9 : index
    %c7_205 = arith.constant 7 : index
    %117 = memref.load %arg4[%c9_204, %c7_205] : memref<10x10xf32, #tpu.memory_space<smem>>
    %c9_206 = arith.constant 9 : index
    %c8_207 = arith.constant 8 : index
    %118 = memref.load %arg4[%c9_206, %c8_207] : memref<10x10xf32, #tpu.memory_space<smem>>
    %c9_208 = arith.constant 9 : index
    %c9_209 = arith.constant 9 : index
    %119 = memref.load %arg4[%c9_208, %c9_209] : memref<10x10xf32, #tpu.memory_space<smem>>
    %c0_210 = arith.constant 0 : index
    %120 = memref.load %arg5[%c0_210] : memref<10xf32, #tpu.memory_space<smem>>
    %c1_211 = arith.constant 1 : index
    %121 = memref.load %arg5[%c1_211] : memref<10xf32, #tpu.memory_space<smem>>
    %c2_212 = arith.constant 2 : index
    %122 = memref.load %arg5[%c2_212] : memref<10xf32, #tpu.memory_space<smem>>
    %c3_213 = arith.constant 3 : index
    %123 = memref.load %arg5[%c3_213] : memref<10xf32, #tpu.memory_space<smem>>
    %c4_214 = arith.constant 4 : index
    %124 = memref.load %arg5[%c4_214] : memref<10xf32, #tpu.memory_space<smem>>
    %c5_215 = arith.constant 5 : index
    %125 = memref.load %arg5[%c5_215] : memref<10xf32, #tpu.memory_space<smem>>
    %c6_216 = arith.constant 6 : index
    %126 = memref.load %arg5[%c6_216] : memref<10xf32, #tpu.memory_space<smem>>
    %c7_217 = arith.constant 7 : index
    %127 = memref.load %arg5[%c7_217] : memref<10xf32, #tpu.memory_space<smem>>
    %c8_218 = arith.constant 8 : index
    %128 = memref.load %arg5[%c8_218] : memref<10xf32, #tpu.memory_space<smem>>
    %c9_219 = arith.constant 9 : index
    %129 = memref.load %arg5[%c9_219] : memref<10xf32, #tpu.memory_space<smem>>
    %c0_220 = arith.constant 0 : index
    %130 = memref.load %arg6[%c0_220] : memref<10xf32, #tpu.memory_space<smem>>
    %c1_221 = arith.constant 1 : index
    %131 = memref.load %arg6[%c1_221] : memref<10xf32, #tpu.memory_space<smem>>
    %c2_222 = arith.constant 2 : index
    %132 = memref.load %arg6[%c2_222] : memref<10xf32, #tpu.memory_space<smem>>
    %c3_223 = arith.constant 3 : index
    %133 = memref.load %arg6[%c3_223] : memref<10xf32, #tpu.memory_space<smem>>
    %c4_224 = arith.constant 4 : index
    %134 = memref.load %arg6[%c4_224] : memref<10xf32, #tpu.memory_space<smem>>
    %c5_225 = arith.constant 5 : index
    %135 = memref.load %arg6[%c5_225] : memref<10xf32, #tpu.memory_space<smem>>
    %c6_226 = arith.constant 6 : index
    %136 = memref.load %arg6[%c6_226] : memref<10xf32, #tpu.memory_space<smem>>
    %c7_227 = arith.constant 7 : index
    %137 = memref.load %arg6[%c7_227] : memref<10xf32, #tpu.memory_space<smem>>
    %c8_228 = arith.constant 8 : index
    %138 = memref.load %arg6[%c8_228] : memref<10xf32, #tpu.memory_space<smem>>
    %c9_229 = arith.constant 9 : index
    %139 = memref.load %arg6[%c9_229] : memref<10xf32, #tpu.memory_space<smem>>
    %c0_230 = arith.constant 0 : index
    %140 = memref.load %arg7[%c0_230] : memref<1xf32, #tpu.memory_space<smem>>
    %c0_i32 = arith.constant 0 : i32
    %c16_i32 = arith.constant 16 : i32
    %141 = arith.muli %c0_i32, %c16_i32 : i32
    %142 = tpu.assume_multiple %141, 16 : i32
    %143 = arith.index_cast %142 : i32 to index
    %c0_231 = arith.constant 0 : index
    %144 = vector.load %arg1[%143, %c0_231] : memref<16x128xf32, #tpu.memory_space<vmem>>, vector<16x128xf32>
    %145 = vector.broadcast %0 : f32 to vector<16x128xf32>
    %146 = arith.mulf %144, %145 : vector<16x128xf32>
    %147 = vector.broadcast %10 : f32 to vector<16x128xf32>
    %148 = arith.addf %146, %147 : vector<16x128xf32>
    %cst = arith.constant 0.000000e+00 : f32
    %149 = vector.broadcast %cst : f32 to vector<16x128xf32>
    %150 = arith.maximumf %148, %149 : vector<16x128xf32>
    %151 = vector.broadcast %20 : f32 to vector<16x128xf32>
    %152 = arith.mulf %150, %151 : vector<16x128xf32>
    %153 = vector.broadcast %21 : f32 to vector<16x128xf32>
    %154 = arith.mulf %150, %153 : vector<16x128xf32>
    %155 = vector.broadcast %22 : f32 to vector<16x128xf32>
    %156 = arith.mulf %150, %155 : vector<16x128xf32>
    %157 = vector.broadcast %23 : f32 to vector<16x128xf32>
    %158 = arith.mulf %150, %157 : vector<16x128xf32>
    %159 = vector.broadcast %24 : f32 to vector<16x128xf32>
    %160 = arith.mulf %150, %159 : vector<16x128xf32>
    %161 = vector.broadcast %25 : f32 to vector<16x128xf32>
    %162 = arith.mulf %150, %161 : vector<16x128xf32>
    %163 = vector.broadcast %26 : f32 to vector<16x128xf32>
    %164 = arith.mulf %150, %163 : vector<16x128xf32>
    %165 = vector.broadcast %27 : f32 to vector<16x128xf32>
    %166 = arith.mulf %150, %165 : vector<16x128xf32>
    %167 = vector.broadcast %28 : f32 to vector<16x128xf32>
    %168 = arith.mulf %150, %167 : vector<16x128xf32>
    %169 = vector.broadcast %29 : f32 to vector<16x128xf32>
    %170 = arith.mulf %150, %169 : vector<16x128xf32>
    %171 = vector.broadcast %1 : f32 to vector<16x128xf32>
    %172 = arith.mulf %144, %171 : vector<16x128xf32>
    %173 = vector.broadcast %11 : f32 to vector<16x128xf32>
    %174 = arith.addf %172, %173 : vector<16x128xf32>
    %cst_232 = arith.constant 0.000000e+00 : f32
    %175 = vector.broadcast %cst_232 : f32 to vector<16x128xf32>
    %176 = arith.maximumf %174, %175 : vector<16x128xf32>
    %177 = vector.broadcast %30 : f32 to vector<16x128xf32>
    %178 = arith.mulf %176, %177 : vector<16x128xf32>
    %179 = arith.addf %152, %178 : vector<16x128xf32>
    %180 = vector.broadcast %31 : f32 to vector<16x128xf32>
    %181 = arith.mulf %176, %180 : vector<16x128xf32>
    %182 = arith.addf %154, %181 : vector<16x128xf32>
    %183 = vector.broadcast %32 : f32 to vector<16x128xf32>
    %184 = arith.mulf %176, %183 : vector<16x128xf32>
    %185 = arith.addf %156, %184 : vector<16x128xf32>
    %186 = vector.broadcast %33 : f32 to vector<16x128xf32>
    %187 = arith.mulf %176, %186 : vector<16x128xf32>
    %188 = arith.addf %158, %187 : vector<16x128xf32>
    %189 = vector.broadcast %34 : f32 to vector<16x128xf32>
    %190 = arith.mulf %176, %189 : vector<16x128xf32>
    %191 = arith.addf %160, %190 : vector<16x128xf32>
    %192 = vector.broadcast %35 : f32 to vector<16x128xf32>
    %193 = arith.mulf %176, %192 : vector<16x128xf32>
    %194 = arith.addf %162, %193 : vector<16x128xf32>
    %195 = vector.broadcast %36 : f32 to vector<16x128xf32>
    %196 = arith.mulf %176, %195 : vector<16x128xf32>
    %197 = arith.addf %164, %196 : vector<16x128xf32>
    %198 = vector.broadcast %37 : f32 to vector<16x128xf32>
    %199 = arith.mulf %176, %198 : vector<16x128xf32>
    %200 = arith.addf %166, %199 : vector<16x128xf32>
    %201 = vector.broadcast %38 : f32 to vector<16x128xf32>
    %202 = arith.mulf %176, %201 : vector<16x128xf32>
    %203 = arith.addf %168, %202 : vector<16x128xf32>
    %204 = vector.broadcast %39 : f32 to vector<16x128xf32>
    %205 = arith.mulf %176, %204 : vector<16x128xf32>
    %206 = arith.addf %170, %205 : vector<16x128xf32>
    %207 = vector.broadcast %2 : f32 to vector<16x128xf32>
    %208 = arith.mulf %144, %207 : vector<16x128xf32>
    %209 = vector.broadcast %12 : f32 to vector<16x128xf32>
    %210 = arith.addf %208, %209 : vector<16x128xf32>
    %cst_233 = arith.constant 0.000000e+00 : f32
    %211 = vector.broadcast %cst_233 : f32 to vector<16x128xf32>
    %212 = arith.maximumf %210, %211 : vector<16x128xf32>
    %213 = vector.broadcast %40 : f32 to vector<16x128xf32>
    %214 = arith.mulf %212, %213 : vector<16x128xf32>
    %215 = arith.addf %179, %214 : vector<16x128xf32>
    %216 = vector.broadcast %41 : f32 to vector<16x128xf32>
    %217 = arith.mulf %212, %216 : vector<16x128xf32>
    %218 = arith.addf %182, %217 : vector<16x128xf32>
    %219 = vector.broadcast %42 : f32 to vector<16x128xf32>
    %220 = arith.mulf %212, %219 : vector<16x128xf32>
    %221 = arith.addf %185, %220 : vector<16x128xf32>
    %222 = vector.broadcast %43 : f32 to vector<16x128xf32>
    %223 = arith.mulf %212, %222 : vector<16x128xf32>
    %224 = arith.addf %188, %223 : vector<16x128xf32>
    %225 = vector.broadcast %44 : f32 to vector<16x128xf32>
    %226 = arith.mulf %212, %225 : vector<16x128xf32>
    %227 = arith.addf %191, %226 : vector<16x128xf32>
    %228 = vector.broadcast %45 : f32 to vector<16x128xf32>
    %229 = arith.mulf %212, %228 : vector<16x128xf32>
    %230 = arith.addf %194, %229 : vector<16x128xf32>
    %231 = vector.broadcast %46 : f32 to vector<16x128xf32>
    %232 = arith.mulf %212, %231 : vector<16x128xf32>
    %233 = arith.addf %197, %232 : vector<16x128xf32>
    %234 = vector.broadcast %47 : f32 to vector<16x128xf32>
    %235 = arith.mulf %212, %234 : vector<16x128xf32>
    %236 = arith.addf %200, %235 : vector<16x128xf32>
    %237 = vector.broadcast %48 : f32 to vector<16x128xf32>
    %238 = arith.mulf %212, %237 : vector<16x128xf32>
    %239 = arith.addf %203, %238 : vector<16x128xf32>
    %240 = vector.broadcast %49 : f32 to vector<16x128xf32>
    %241 = arith.mulf %212, %240 : vector<16x128xf32>
    %242 = arith.addf %206, %241 : vector<16x128xf32>
    %243 = vector.broadcast %3 : f32 to vector<16x128xf32>
    %244 = arith.mulf %144, %243 : vector<16x128xf32>
    %245 = vector.broadcast %13 : f32 to vector<16x128xf32>
    %246 = arith.addf %244, %245 : vector<16x128xf32>
    %cst_234 = arith.constant 0.000000e+00 : f32
    %247 = vector.broadcast %cst_234 : f32 to vector<16x128xf32>
    %248 = arith.maximumf %246, %247 : vector<16x128xf32>
    %249 = vector.broadcast %50 : f32 to vector<16x128xf32>
    %250 = arith.mulf %248, %249 : vector<16x128xf32>
    %251 = arith.addf %215, %250 : vector<16x128xf32>
    %252 = vector.broadcast %51 : f32 to vector<16x128xf32>
    %253 = arith.mulf %248, %252 : vector<16x128xf32>
    %254 = arith.addf %218, %253 : vector<16x128xf32>
    %255 = vector.broadcast %52 : f32 to vector<16x128xf32>
    %256 = arith.mulf %248, %255 : vector<16x128xf32>
    %257 = arith.addf %221, %256 : vector<16x128xf32>
    %258 = vector.broadcast %53 : f32 to vector<16x128xf32>
    %259 = arith.mulf %248, %258 : vector<16x128xf32>
    %260 = arith.addf %224, %259 : vector<16x128xf32>
    %261 = vector.broadcast %54 : f32 to vector<16x128xf32>
    %262 = arith.mulf %248, %261 : vector<16x128xf32>
    %263 = arith.addf %227, %262 : vector<16x128xf32>
    %264 = vector.broadcast %55 : f32 to vector<16x128xf32>
    %265 = arith.mulf %248, %264 : vector<16x128xf32>
    %266 = arith.addf %230, %265 : vector<16x128xf32>
    %267 = vector.broadcast %56 : f32 to vector<16x128xf32>
    %268 = arith.mulf %248, %267 : vector<16x128xf32>
    %269 = arith.addf %233, %268 : vector<16x128xf32>
    %270 = vector.broadcast %57 : f32 to vector<16x128xf32>
    %271 = arith.mulf %248, %270 : vector<16x128xf32>
    %272 = arith.addf %236, %271 : vector<16x128xf32>
    %273 = vector.broadcast %58 : f32 to vector<16x128xf32>
    %274 = arith.mulf %248, %273 : vector<16x128xf32>
    %275 = arith.addf %239, %274 : vector<16x128xf32>
    %276 = vector.broadcast %59 : f32 to vector<16x128xf32>
    %277 = arith.mulf %248, %276 : vector<16x128xf32>
    %278 = arith.addf %242, %277 : vector<16x128xf32>
    %279 = vector.broadcast %4 : f32 to vector<16x128xf32>
    %280 = arith.mulf %144, %279 : vector<16x128xf32>
    %281 = vector.broadcast %14 : f32 to vector<16x128xf32>
    %282 = arith.addf %280, %281 : vector<16x128xf32>
    %cst_235 = arith.constant 0.000000e+00 : f32
    %283 = vector.broadcast %cst_235 : f32 to vector<16x128xf32>
    %284 = arith.maximumf %282, %283 : vector<16x128xf32>
    %285 = vector.broadcast %60 : f32 to vector<16x128xf32>
    %286 = arith.mulf %284, %285 : vector<16x128xf32>
    %287 = arith.addf %251, %286 : vector<16x128xf32>
    %288 = vector.broadcast %61 : f32 to vector<16x128xf32>
    %289 = arith.mulf %284, %288 : vector<16x128xf32>
    %290 = arith.addf %254, %289 : vector<16x128xf32>
    %291 = vector.broadcast %62 : f32 to vector<16x128xf32>
    %292 = arith.mulf %284, %291 : vector<16x128xf32>
    %293 = arith.addf %257, %292 : vector<16x128xf32>
    %294 = vector.broadcast %63 : f32 to vector<16x128xf32>
    %295 = arith.mulf %284, %294 : vector<16x128xf32>
    %296 = arith.addf %260, %295 : vector<16x128xf32>
    %297 = vector.broadcast %64 : f32 to vector<16x128xf32>
    %298 = arith.mulf %284, %297 : vector<16x128xf32>
    %299 = arith.addf %263, %298 : vector<16x128xf32>
    %300 = vector.broadcast %65 : f32 to vector<16x128xf32>
    %301 = arith.mulf %284, %300 : vector<16x128xf32>
    %302 = arith.addf %266, %301 : vector<16x128xf32>
    %303 = vector.broadcast %66 : f32 to vector<16x128xf32>
    %304 = arith.mulf %284, %303 : vector<16x128xf32>
    %305 = arith.addf %269, %304 : vector<16x128xf32>
    %306 = vector.broadcast %67 : f32 to vector<16x128xf32>
    %307 = arith.mulf %284, %306 : vector<16x128xf32>
    %308 = arith.addf %272, %307 : vector<16x128xf32>
    %309 = vector.broadcast %68 : f32 to vector<16x128xf32>
    %310 = arith.mulf %284, %309 : vector<16x128xf32>
    %311 = arith.addf %275, %310 : vector<16x128xf32>
    %312 = vector.broadcast %69 : f32 to vector<16x128xf32>
    %313 = arith.mulf %284, %312 : vector<16x128xf32>
    %314 = arith.addf %278, %313 : vector<16x128xf32>
    %315 = vector.broadcast %5 : f32 to vector<16x128xf32>
    %316 = arith.mulf %144, %315 : vector<16x128xf32>
    %317 = vector.broadcast %15 : f32 to vector<16x128xf32>
    %318 = arith.addf %316, %317 : vector<16x128xf32>
    %cst_236 = arith.constant 0.000000e+00 : f32
    %319 = vector.broadcast %cst_236 : f32 to vector<16x128xf32>
    %320 = arith.maximumf %318, %319 : vector<16x128xf32>
    %321 = vector.broadcast %70 : f32 to vector<16x128xf32>
    %322 = arith.mulf %320, %321 : vector<16x128xf32>
    %323 = arith.addf %287, %322 : vector<16x128xf32>
    %324 = vector.broadcast %71 : f32 to vector<16x128xf32>
    %325 = arith.mulf %320, %324 : vector<16x128xf32>
    %326 = arith.addf %290, %325 : vector<16x128xf32>
    %327 = vector.broadcast %72 : f32 to vector<16x128xf32>
    %328 = arith.mulf %320, %327 : vector<16x128xf32>
    %329 = arith.addf %293, %328 : vector<16x128xf32>
    %330 = vector.broadcast %73 : f32 to vector<16x128xf32>
    %331 = arith.mulf %320, %330 : vector<16x128xf32>
    %332 = arith.addf %296, %331 : vector<16x128xf32>
    %333 = vector.broadcast %74 : f32 to vector<16x128xf32>
    %334 = arith.mulf %320, %333 : vector<16x128xf32>
    %335 = arith.addf %299, %334 : vector<16x128xf32>
    %336 = vector.broadcast %75 : f32 to vector<16x128xf32>
    %337 = arith.mulf %320, %336 : vector<16x128xf32>
    %338 = arith.addf %302, %337 : vector<16x128xf32>
    %339 = vector.broadcast %76 : f32 to vector<16x128xf32>
    %340 = arith.mulf %320, %339 : vector<16x128xf32>
    %341 = arith.addf %305, %340 : vector<16x128xf32>
    %342 = vector.broadcast %77 : f32 to vector<16x128xf32>
    %343 = arith.mulf %320, %342 : vector<16x128xf32>
    %344 = arith.addf %308, %343 : vector<16x128xf32>
    %345 = vector.broadcast %78 : f32 to vector<16x128xf32>
    %346 = arith.mulf %320, %345 : vector<16x128xf32>
    %347 = arith.addf %311, %346 : vector<16x128xf32>
    %348 = vector.broadcast %79 : f32 to vector<16x128xf32>
    %349 = arith.mulf %320, %348 : vector<16x128xf32>
    %350 = arith.addf %314, %349 : vector<16x128xf32>
    %351 = vector.broadcast %6 : f32 to vector<16x128xf32>
    %352 = arith.mulf %144, %351 : vector<16x128xf32>
    %353 = vector.broadcast %16 : f32 to vector<16x128xf32>
    %354 = arith.addf %352, %353 : vector<16x128xf32>
    %cst_237 = arith.constant 0.000000e+00 : f32
    %355 = vector.broadcast %cst_237 : f32 to vector<16x128xf32>
    %356 = arith.maximumf %354, %355 : vector<16x128xf32>
    %357 = vector.broadcast %80 : f32 to vector<16x128xf32>
    %358 = arith.mulf %356, %357 : vector<16x128xf32>
    %359 = arith.addf %323, %358 : vector<16x128xf32>
    %360 = vector.broadcast %81 : f32 to vector<16x128xf32>
    %361 = arith.mulf %356, %360 : vector<16x128xf32>
    %362 = arith.addf %326, %361 : vector<16x128xf32>
    %363 = vector.broadcast %82 : f32 to vector<16x128xf32>
    %364 = arith.mulf %356, %363 : vector<16x128xf32>
    %365 = arith.addf %329, %364 : vector<16x128xf32>
    %366 = vector.broadcast %83 : f32 to vector<16x128xf32>
    %367 = arith.mulf %356, %366 : vector<16x128xf32>
    %368 = arith.addf %332, %367 : vector<16x128xf32>
    %369 = vector.broadcast %84 : f32 to vector<16x128xf32>
    %370 = arith.mulf %356, %369 : vector<16x128xf32>
    %371 = arith.addf %335, %370 : vector<16x128xf32>
    %372 = vector.broadcast %85 : f32 to vector<16x128xf32>
    %373 = arith.mulf %356, %372 : vector<16x128xf32>
    %374 = arith.addf %338, %373 : vector<16x128xf32>
    %375 = vector.broadcast %86 : f32 to vector<16x128xf32>
    %376 = arith.mulf %356, %375 : vector<16x128xf32>
    %377 = arith.addf %341, %376 : vector<16x128xf32>
    %378 = vector.broadcast %87 : f32 to vector<16x128xf32>
    %379 = arith.mulf %356, %378 : vector<16x128xf32>
    %380 = arith.addf %344, %379 : vector<16x128xf32>
    %381 = vector.broadcast %88 : f32 to vector<16x128xf32>
    %382 = arith.mulf %356, %381 : vector<16x128xf32>
    %383 = arith.addf %347, %382 : vector<16x128xf32>
    %384 = vector.broadcast %89 : f32 to vector<16x128xf32>
    %385 = arith.mulf %356, %384 : vector<16x128xf32>
    %386 = arith.addf %350, %385 : vector<16x128xf32>
    %387 = vector.broadcast %7 : f32 to vector<16x128xf32>
    %388 = arith.mulf %144, %387 : vector<16x128xf32>
    %389 = vector.broadcast %17 : f32 to vector<16x128xf32>
    %390 = arith.addf %388, %389 : vector<16x128xf32>
    %cst_238 = arith.constant 0.000000e+00 : f32
    %391 = vector.broadcast %cst_238 : f32 to vector<16x128xf32>
    %392 = arith.maximumf %390, %391 : vector<16x128xf32>
    %393 = vector.broadcast %90 : f32 to vector<16x128xf32>
    %394 = arith.mulf %392, %393 : vector<16x128xf32>
    %395 = arith.addf %359, %394 : vector<16x128xf32>
    %396 = vector.broadcast %91 : f32 to vector<16x128xf32>
    %397 = arith.mulf %392, %396 : vector<16x128xf32>
    %398 = arith.addf %362, %397 : vector<16x128xf32>
    %399 = vector.broadcast %92 : f32 to vector<16x128xf32>
    %400 = arith.mulf %392, %399 : vector<16x128xf32>
    %401 = arith.addf %365, %400 : vector<16x128xf32>
    %402 = vector.broadcast %93 : f32 to vector<16x128xf32>
    %403 = arith.mulf %392, %402 : vector<16x128xf32>
    %404 = arith.addf %368, %403 : vector<16x128xf32>
    %405 = vector.broadcast %94 : f32 to vector<16x128xf32>
    %406 = arith.mulf %392, %405 : vector<16x128xf32>
    %407 = arith.addf %371, %406 : vector<16x128xf32>
    %408 = vector.broadcast %95 : f32 to vector<16x128xf32>
    %409 = arith.mulf %392, %408 : vector<16x128xf32>
    %410 = arith.addf %374, %409 : vector<16x128xf32>
    %411 = vector.broadcast %96 : f32 to vector<16x128xf32>
    %412 = arith.mulf %392, %411 : vector<16x128xf32>
    %413 = arith.addf %377, %412 : vector<16x128xf32>
    %414 = vector.broadcast %97 : f32 to vector<16x128xf32>
    %415 = arith.mulf %392, %414 : vector<16x128xf32>
    %416 = arith.addf %380, %415 : vector<16x128xf32>
    %417 = vector.broadcast %98 : f32 to vector<16x128xf32>
    %418 = arith.mulf %392, %417 : vector<16x128xf32>
    %419 = arith.addf %383, %418 : vector<16x128xf32>
    %420 = vector.broadcast %99 : f32 to vector<16x128xf32>
    %421 = arith.mulf %392, %420 : vector<16x128xf32>
    %422 = arith.addf %386, %421 : vector<16x128xf32>
    %423 = vector.broadcast %8 : f32 to vector<16x128xf32>
    %424 = arith.mulf %144, %423 : vector<16x128xf32>
    %425 = vector.broadcast %18 : f32 to vector<16x128xf32>
    %426 = arith.addf %424, %425 : vector<16x128xf32>
    %cst_239 = arith.constant 0.000000e+00 : f32
    %427 = vector.broadcast %cst_239 : f32 to vector<16x128xf32>
    %428 = arith.maximumf %426, %427 : vector<16x128xf32>
    %429 = vector.broadcast %100 : f32 to vector<16x128xf32>
    %430 = arith.mulf %428, %429 : vector<16x128xf32>
    %431 = arith.addf %395, %430 : vector<16x128xf32>
    %432 = vector.broadcast %101 : f32 to vector<16x128xf32>
    %433 = arith.mulf %428, %432 : vector<16x128xf32>
    %434 = arith.addf %398, %433 : vector<16x128xf32>
    %435 = vector.broadcast %102 : f32 to vector<16x128xf32>
    %436 = arith.mulf %428, %435 : vector<16x128xf32>
    %437 = arith.addf %401, %436 : vector<16x128xf32>
    %438 = vector.broadcast %103 : f32 to vector<16x128xf32>
    %439 = arith.mulf %428, %438 : vector<16x128xf32>
    %440 = arith.addf %404, %439 : vector<16x128xf32>
    %441 = vector.broadcast %104 : f32 to vector<16x128xf32>
    %442 = arith.mulf %428, %441 : vector<16x128xf32>
    %443 = arith.addf %407, %442 : vector<16x128xf32>
    %444 = vector.broadcast %105 : f32 to vector<16x128xf32>
    %445 = arith.mulf %428, %444 : vector<16x128xf32>
    %446 = arith.addf %410, %445 : vector<16x128xf32>
    %447 = vector.broadcast %106 : f32 to vector<16x128xf32>
    %448 = arith.mulf %428, %447 : vector<16x128xf32>
    %449 = arith.addf %413, %448 : vector<16x128xf32>
    %450 = vector.broadcast %107 : f32 to vector<16x128xf32>
    %451 = arith.mulf %428, %450 : vector<16x128xf32>
    %452 = arith.addf %416, %451 : vector<16x128xf32>
    %453 = vector.broadcast %108 : f32 to vector<16x128xf32>
    %454 = arith.mulf %428, %453 : vector<16x128xf32>
    %455 = arith.addf %419, %454 : vector<16x128xf32>
    %456 = vector.broadcast %109 : f32 to vector<16x128xf32>
    %457 = arith.mulf %428, %456 : vector<16x128xf32>
    %458 = arith.addf %422, %457 : vector<16x128xf32>
    %459 = vector.broadcast %9 : f32 to vector<16x128xf32>
    %460 = arith.mulf %144, %459 : vector<16x128xf32>
    %461 = vector.broadcast %19 : f32 to vector<16x128xf32>
    %462 = arith.addf %460, %461 : vector<16x128xf32>
    %cst_240 = arith.constant 0.000000e+00 : f32
    %463 = vector.broadcast %cst_240 : f32 to vector<16x128xf32>
    %464 = arith.maximumf %462, %463 : vector<16x128xf32>
    %465 = vector.broadcast %110 : f32 to vector<16x128xf32>
    %466 = arith.mulf %464, %465 : vector<16x128xf32>
    %467 = arith.addf %431, %466 : vector<16x128xf32>
    %468 = vector.broadcast %111 : f32 to vector<16x128xf32>
    %469 = arith.mulf %464, %468 : vector<16x128xf32>
    %470 = arith.addf %434, %469 : vector<16x128xf32>
    %471 = vector.broadcast %112 : f32 to vector<16x128xf32>
    %472 = arith.mulf %464, %471 : vector<16x128xf32>
    %473 = arith.addf %437, %472 : vector<16x128xf32>
    %474 = vector.broadcast %113 : f32 to vector<16x128xf32>
    %475 = arith.mulf %464, %474 : vector<16x128xf32>
    %476 = arith.addf %440, %475 : vector<16x128xf32>
    %477 = vector.broadcast %114 : f32 to vector<16x128xf32>
    %478 = arith.mulf %464, %477 : vector<16x128xf32>
    %479 = arith.addf %443, %478 : vector<16x128xf32>
    %480 = vector.broadcast %115 : f32 to vector<16x128xf32>
    %481 = arith.mulf %464, %480 : vector<16x128xf32>
    %482 = arith.addf %446, %481 : vector<16x128xf32>
    %483 = vector.broadcast %116 : f32 to vector<16x128xf32>
    %484 = arith.mulf %464, %483 : vector<16x128xf32>
    %485 = arith.addf %449, %484 : vector<16x128xf32>
    %486 = vector.broadcast %117 : f32 to vector<16x128xf32>
    %487 = arith.mulf %464, %486 : vector<16x128xf32>
    %488 = arith.addf %452, %487 : vector<16x128xf32>
    %489 = vector.broadcast %118 : f32 to vector<16x128xf32>
    %490 = arith.mulf %464, %489 : vector<16x128xf32>
    %491 = arith.addf %455, %490 : vector<16x128xf32>
    %492 = vector.broadcast %119 : f32 to vector<16x128xf32>
    %493 = arith.mulf %464, %492 : vector<16x128xf32>
    %494 = arith.addf %458, %493 : vector<16x128xf32>
    %495 = vector.broadcast %120 : f32 to vector<16x128xf32>
    %496 = arith.addf %467, %495 : vector<16x128xf32>
    %cst_241 = arith.constant 0.000000e+00 : f32
    %497 = vector.broadcast %cst_241 : f32 to vector<16x128xf32>
    %498 = arith.maximumf %496, %497 : vector<16x128xf32>
    %499 = vector.broadcast %130 : f32 to vector<16x128xf32>
    %500 = arith.mulf %498, %499 : vector<16x128xf32>
    %501 = vector.broadcast %121 : f32 to vector<16x128xf32>
    %502 = arith.addf %470, %501 : vector<16x128xf32>
    %cst_242 = arith.constant 0.000000e+00 : f32
    %503 = vector.broadcast %cst_242 : f32 to vector<16x128xf32>
    %504 = arith.maximumf %502, %503 : vector<16x128xf32>
    %505 = vector.broadcast %131 : f32 to vector<16x128xf32>
    %506 = arith.mulf %504, %505 : vector<16x128xf32>
    %507 = arith.addf %500, %506 : vector<16x128xf32>
    %508 = vector.broadcast %122 : f32 to vector<16x128xf32>
    %509 = arith.addf %473, %508 : vector<16x128xf32>
    %cst_243 = arith.constant 0.000000e+00 : f32
    %510 = vector.broadcast %cst_243 : f32 to vector<16x128xf32>
    %511 = arith.maximumf %509, %510 : vector<16x128xf32>
    %512 = vector.broadcast %132 : f32 to vector<16x128xf32>
    %513 = arith.mulf %511, %512 : vector<16x128xf32>
    %514 = arith.addf %507, %513 : vector<16x128xf32>
    %515 = vector.broadcast %123 : f32 to vector<16x128xf32>
    %516 = arith.addf %476, %515 : vector<16x128xf32>
    %cst_244 = arith.constant 0.000000e+00 : f32
    %517 = vector.broadcast %cst_244 : f32 to vector<16x128xf32>
    %518 = arith.maximumf %516, %517 : vector<16x128xf32>
    %519 = vector.broadcast %133 : f32 to vector<16x128xf32>
    %520 = arith.mulf %518, %519 : vector<16x128xf32>
    %521 = arith.addf %514, %520 : vector<16x128xf32>
    %522 = vector.broadcast %124 : f32 to vector<16x128xf32>
    %523 = arith.addf %479, %522 : vector<16x128xf32>
    %cst_245 = arith.constant 0.000000e+00 : f32
    %524 = vector.broadcast %cst_245 : f32 to vector<16x128xf32>
    %525 = arith.maximumf %523, %524 : vector<16x128xf32>
    %526 = vector.broadcast %134 : f32 to vector<16x128xf32>
    %527 = arith.mulf %525, %526 : vector<16x128xf32>
    %528 = arith.addf %521, %527 : vector<16x128xf32>
    %529 = vector.broadcast %125 : f32 to vector<16x128xf32>
    %530 = arith.addf %482, %529 : vector<16x128xf32>
    %cst_246 = arith.constant 0.000000e+00 : f32
    %531 = vector.broadcast %cst_246 : f32 to vector<16x128xf32>
    %532 = arith.maximumf %530, %531 : vector<16x128xf32>
    %533 = vector.broadcast %135 : f32 to vector<16x128xf32>
    %534 = arith.mulf %532, %533 : vector<16x128xf32>
    %535 = arith.addf %528, %534 : vector<16x128xf32>
    %536 = vector.broadcast %126 : f32 to vector<16x128xf32>
    %537 = arith.addf %485, %536 : vector<16x128xf32>
    %cst_247 = arith.constant 0.000000e+00 : f32
    %538 = vector.broadcast %cst_247 : f32 to vector<16x128xf32>
    %539 = arith.maximumf %537, %538 : vector<16x128xf32>
    %540 = vector.broadcast %136 : f32 to vector<16x128xf32>
    %541 = arith.mulf %539, %540 : vector<16x128xf32>
    %542 = arith.addf %535, %541 : vector<16x128xf32>
    %543 = vector.broadcast %127 : f32 to vector<16x128xf32>
    %544 = arith.addf %488, %543 : vector<16x128xf32>
    %cst_248 = arith.constant 0.000000e+00 : f32
    %545 = vector.broadcast %cst_248 : f32 to vector<16x128xf32>
    %546 = arith.maximumf %544, %545 : vector<16x128xf32>
    %547 = vector.broadcast %137 : f32 to vector<16x128xf32>
    %548 = arith.mulf %546, %547 : vector<16x128xf32>
    %549 = arith.addf %542, %548 : vector<16x128xf32>
    %550 = vector.broadcast %128 : f32 to vector<16x128xf32>
    %551 = arith.addf %491, %550 : vector<16x128xf32>
    %cst_249 = arith.constant 0.000000e+00 : f32
    %552 = vector.broadcast %cst_249 : f32 to vector<16x128xf32>
    %553 = arith.maximumf %551, %552 : vector<16x128xf32>
    %554 = vector.broadcast %138 : f32 to vector<16x128xf32>
    %555 = arith.mulf %553, %554 : vector<16x128xf32>
    %556 = arith.addf %549, %555 : vector<16x128xf32>
    %557 = vector.broadcast %129 : f32 to vector<16x128xf32>
    %558 = arith.addf %494, %557 : vector<16x128xf32>
    %cst_250 = arith.constant 0.000000e+00 : f32
    %559 = vector.broadcast %cst_250 : f32 to vector<16x128xf32>
    %560 = arith.maximumf %558, %559 : vector<16x128xf32>
    %561 = vector.broadcast %139 : f32 to vector<16x128xf32>
    %562 = arith.mulf %560, %561 : vector<16x128xf32>
    %563 = arith.addf %556, %562 : vector<16x128xf32>
    %564 = vector.broadcast %140 : f32 to vector<16x128xf32>
    %565 = arith.addf %563, %564 : vector<16x128xf32>
    %566 = arith.index_cast %142 : i32 to index
    %c0_251 = arith.constant 0 : index
    %567 = vector.load %arg8[%566, %c0_251] : memref<16x128xf32, #tpu.memory_space<vmem>>, vector<16x128xf32>
    tpu.vector_store %arg8[%566, %c0_251], %565 {strides = array<i32>} : memref<16x128xf32, #tpu.memory_space<vmem>>, vector<16x128xf32>,
    %c1_i32 = arith.constant 1 : i32
    return
  }
  func.func @transform_0(%arg0: i32) -> (i32, i32) {
    %c0_i32 = arith.constant 0 : i32
    %c0_i32_0 = arith.constant 0 : i32
    return %arg0, %c0_i32 : i32, i32
  }
  func.func @transform_1(%arg0: i32) -> i32 {
    %c0_i32 = arith.constant 0 : i32
    %c0_i32_0 = arith.constant 0 : i32
    return %c0_i32 : i32
  }
  func.func @transform_2(%arg0: i32) -> i32 {
    %c0_i32 = arith.constant 0 : i32
    %c0_i32_0 = arith.constant 0 : i32
    return %c0_i32 : i32
  }
  func.func @transform_3(%arg0: i32) -> (i32, i32) {
    %c0_i32 = arith.constant 0 : i32
    %c0_i32_0 = arith.constant 0 : i32
    %c0_i32_1 = arith.constant 0 : i32
    return %c0_i32, %c0_i32_0 : i32, i32
  }
  func.func @transform_4(%arg0: i32) -> i32 {
    %c0_i32 = arith.constant 0 : i32
    %c0_i32_0 = arith.constant 0 : i32
    return %c0_i32 : i32
  }
  func.func @transform_5(%arg0: i32) -> i32 {
    %c0_i32 = arith.constant 0 : i32
    %c0_i32_0 = arith.constant 0 : i32
    return %c0_i32 : i32
  }
  func.func @transform_6(%arg0: i32) -> i32 {
    %c0_i32 = arith.constant 0 : i32
    %c0_i32_0 = arith.constant 0 : i32
    return %c0_i32 : i32
  }
  func.func @transform_7(%arg0: i32) -> (i32, i32) {
    %c0_i32 = arith.constant 0 : i32
    %c0_i32_0 = arith.constant 0 : i32
    return %arg0, %c0_i32 : i32, i32
  }
}

</mosaic_0001>

<llo_original>
// kernel: tpu_custom_call.1
$region0: #{tpu_custom_call.1}
  #allocation0 [shape = 'u32[]', space=smem, size = 0x4, offset = 0x4, fixed_abs, tag = 'smem constant byte address 0x4 - core index']
  #allocation1 [shape = 'u32[144,128]{1,0:T(1,128)}', space=vmem, size = 0x12000, scoped, tag = 'internal scratch']
  #allocation2 [shape = 'f32[1]{0:T(128)S(6)}', space=smem, size = 0x200, scoped, tag = 'scoped memory for tpu_custom_call.1']
  %s0 = inlined_call_operand.hbm [shape: f32[16,128], index: 0, kind: input, shape index: {}]
  %s1 = inlined_call_operand.vmem [shape: f32[10], index: 1, kind: input, shape index: {}]
  %s2 = inlined_call_operand.vmem [shape: f32[10], index: 2, kind: input, shape index: {}]
  %s3 = inlined_call_operand.hbm [shape: f32[10,10], index: 3, kind: input, shape index: {}]
  %s4 = inlined_call_operand.vmem [shape: f32[10], index: 4, kind: input, shape index: {}]
  %s5 = inlined_call_operand.vmem [shape: f32[10], index: 5, kind: input, shape index: {}]
  %s6 = inlined_call_operand.<no memory space> [shape: f32[1], index: 6, kind: input, shape index: {}]
  %s7 = inlined_call_operand.hbm [shape: f32[16,128], index: 7, kind: output, shape index: {}]
  %s8 = sld [smem:[#allocation0]]
  $region62: #{tpu_custom_call.1} parent=0
    _
  %s10 = ssub.s32 1, %s8
  %s11 = scalar_select 0, %s10, %s8
  %12 = sst [smem:[#allocation2]] %s6
  $region1: #{tpu_custom_call.1} parent=0
    #allocation3 [shape = 'u8[8192]{0}', space=vmem, size = 0x2000, scoped, tag = 'input window, operand 0, single buffered']
    #allocation4 [shape = 's32[1]{0}', space=sflag, size = 0x4, scoped, tag = 'scoped memory for tpu_custom_call.1']
    #allocation5 [shape = 's32[1]{0}', space=sflag, size = 0x4, scoped, tag = 'scoped memory for tpu_custom_call.1']
    #allocation6 [shape = 's32[1]{0}', space=sflag, size = 0x4, scoped, tag = 'scoped memory for tpu_custom_call.1']
    #allocation7 [shape = 's32[1]{0}', space=sflag, size = 0x4, scoped, tag = 'scoped memory for tpu_custom_call.1']
    #allocation8 [shape = 'u8[512]{0}', space=smem, size = 0x200, scoped, tag = 'input window, operand 1, single buffered']
    #allocation9 [shape = 'u8[512]{0}', space=smem, size = 0x200, scoped, tag = 'input window, operand 2, single buffered']
    #allocation10 [shape = 's32[1]{0}', space=sflag, size = 0x4, scoped, tag = 'scoped memory for tpu_custom_call.1']
    #allocation11 [shape = 'u8[8192]{0}', space=smem, size = 0x2000, scoped, tag = 'input window, operand 3, single buffered']
    #allocation12 [shape = 'u8[512]{0}', space=smem, size = 0x200, scoped, tag = 'input window, operand 4, single buffered']
    #allocation13 [shape = 'u8[512]{0}', space=smem, size = 0x200, scoped, tag = 'input window, operand 5, single buffered']
    #allocation14 [shape = 's32[1]{0}', space=sflag, size = 0x4, scoped, tag = 'scoped memory for tpu_custom_call.1']
    #allocation15 [shape = 'u8[8192]{0}', space=vmem, size = 0x2000, scoped, tag = 'output window, operand 0, single buffered']
    %13 = vsyncpa [#allocation4], 0
    %14 = vsyncpa [#allocation7], 0
    %15 = vsyncpa [#allocation10], 0
    %16 = vsyncpa [#allocation6], 0
    %17 = vsyncpa [#allocation14], 0
    %18 = vsyncpa [#allocation5], 0
    // Predicated region
    $region2: #{tpu_custom_call.1} parent=1 // pred_check
      _
    $region3: #{tpu_custom_call.1} parent=1 // pred_check_branch
      %20 = sbr.rel (0) target = $region5
    $region4: #{tpu_custom_call.1} parent=1 // pred_region
      %s22 = ssub.s32 256, 256
      %23 = vsyncadd [#allocation4], %s22
      %s24 = sshll.u32 [#allocation3], 4
      %s25 = int_to_ptr.vmem [resolvable:$true] %s24
      %30 = dma.hbm_to_vmem [thread:$0]  %s0, 256, %s25, [#allocation4], 128, 128, 8
    $region5: #{tpu_custom_call.1} parent=1 // pred_fallthru
      _
    // Predicated region
    $region6: #{tpu_custom_call.1} parent=1 // pred_check
      _
    $region7: #{tpu_custom_call.1} parent=1 // pred_check_branch
      %32 = sbr.rel (0) target = $region9
    $region8: #{tpu_custom_call.1} parent=1 // pred_region
      %s34 = ssub.s32 16, 16
      %35 = vsyncadd [#allocation7], %s34
      %s37 = sshll.u32 %s1, 4
      %s38 = int_to_ptr.vmem [resolvable:$true] %s37
      %40 = dma.vmem_to_smem %s38, 16, [#allocation8], [#allocation7]
    $region9: #{tpu_custom_call.1} parent=1 // pred_fallthru
      _
    // Predicated region
    $region10: #{tpu_custom_call.1} parent=1 // pred_check
      _
    $region11: #{tpu_custom_call.1} parent=1 // pred_check_branch
      %42 = sbr.rel (0) target = $region13
    $region12: #{tpu_custom_call.1} parent=1 // pred_region
      %s44 = ssub.s32 16, 16
      %45 = vsyncadd [#allocation10], %s44
      %s47 = sshll.u32 %s2, 4
      %s48 = int_to_ptr.vmem [resolvable:$true] %s47
      %50 = dma.vmem_to_smem %s48, 16, [#allocation9], [#allocation10]
    $region13: #{tpu_custom_call.1} parent=1 // pred_fallthru
      _
    // Predicated region
    $region14: #{tpu_custom_call.1} parent=1 // pred_check
      _
    $region15: #{tpu_custom_call.1} parent=1 // pred_check_branch
      %52 = sbr.rel (0) target = $region17
    $region16: #{tpu_custom_call.1} parent=1 // pred_region
      %s54 = ssub.s32 256, 256
      %55 = vsyncadd [#allocation6], %s54
      %60 = dma.hbm_to_smem %s3, 256, [#allocation11], [#allocation6], 128, 128, 8
    $region17: #{tpu_custom_call.1} parent=1 // pred_fallthru
      _
    // Predicated region
    $region18: #{tpu_custom_call.1} parent=1 // pred_check
      _
    $region19: #{tpu_custom_call.1} parent=1 // pred_check_branch
      %62 = sbr.rel (0) target = $region21
    $region20: #{tpu_custom_call.1} parent=1 // pred_region
      %s64 = ssub.s32 16, 16
      %65 = vsyncadd [#allocation10], %s64
      %s67 = sshll.u32 %s4, 4
      %s68 = int_to_ptr.vmem [resolvable:$true] %s67
      %70 = dma.vmem_to_smem %s68, 16, [#allocation12], [#allocation10]
    $region21: #{tpu_custom_call.1} parent=1 // pred_fallthru
      _
    // Predicated region
    $region22: #{tpu_custom_call.1} parent=1 // pred_check
      _
    $region23: #{tpu_custom_call.1} parent=1 // pred_check_branch
      %72 = sbr.rel (0) target = $region25
    $region24: #{tpu_custom_call.1} parent=1 // pred_region
      %s74 = ssub.s32 16, 16
      %75 = vsyncadd [#allocation14], %s74
      %s77 = sshll.u32 %s5, 4
      %s78 = int_to_ptr.vmem [resolvable:$true] %s77
      %80 = dma.vmem_to_smem %s78, 16, [#allocation13], [#allocation14]
    $region25: #{tpu_custom_call.1} parent=1 // pred_fallthru
      _
    // Predicated region
    $region26: #{tpu_custom_call.1} parent=1 // pred_check
      _
    $region27: #{tpu_custom_call.1} parent=1 // pred_check_branch
      %82 = sbr.rel (0) target = $region29
    $region28: #{tpu_custom_call.1} parent=1 // pred_region
      _
    $region29: #{tpu_custom_call.1} parent=1 // pred_fallthru
      _
    // Predicated region
    $region30: #{tpu_custom_call.1} parent=1 // pred_check
      _
    $region31: #{tpu_custom_call.1} parent=1 // pred_check_branch
      %84 = sbr.rel (0) target = $region33
    $region32: #{tpu_custom_call.1} parent=1 // pred_region
      %85 = dma.done [#allocation4], 256
    $region33: #{tpu_custom_call.1} parent=1 // pred_fallthru
      _
    // Predicated region
    $region34: #{tpu_custom_call.1} parent=1 // pred_check
      _
    $region35: #{tpu_custom_call.1} parent=1 // pred_check_branch
      %87 = sbr.rel (0) target = $region37
    $region36: #{tpu_custom_call.1} parent=1 // pred_region
      %88 = dma.done [#allocation7], 16
    $region37: #{tpu_custom_call.1} parent=1 // pred_fallthru
      _
    // Predicated region
    $region38: #{tpu_custom_call.1} parent=1 // pred_check
      _
    $region39: #{tpu_custom_call.1} parent=1 // pred_check_branch
      %90 = sbr.rel (0) target = $region41
    $region40: #{tpu_custom_call.1} parent=1 // pred_region
      %91 = dma.done [#allocation10], 16
    $region41: #{tpu_custom_call.1} parent=1 // pred_fallthru
      _
    // Predicated region
    $region42: #{tpu_custom_call.1} parent=1 // pred_check
      _
    $region43: #{tpu_custom_call.1} parent=1 // pred_check_branch
      %93 = sbr.rel (0) target = $region45
    $region44: #{tpu_custom_call.1} parent=1 // pred_region
      %94 = dma.done [#allocation6], 256
    $region45: #{tpu_custom_call.1} parent=1 // pred_fallthru
      _
    // Predicated region
    $region46: #{tpu_custom_call.1} parent=1 // pred_check
      _
    $region47: #{tpu_custom_call.1} parent=1 // pred_check_branch
      %96 = sbr.rel (0) target = $region49
    $region48: #{tpu_custom_call.1} parent=1 // pred_region
      %97 = dma.done [#allocation10], 16
    $region49: #{tpu_custom_call.1} parent=1 // pred_fallthru
      _
    // Predicated region
    $region50: #{tpu_custom_call.1} parent=1 // pred_check
      _
    $region51: #{tpu_custom_call.1} parent=1 // pred_check_branch
      %99 = sbr.rel (0) target = $region53
    $region52: #{tpu_custom_call.1} parent=1 // pred_region
      %100 = dma.done [#allocation14], 16
    $region53: #{tpu_custom_call.1} parent=1 // pred_fallthru
      _
    %101 = sfence
    %s102 = sld [smem:[#allocation8]]
    %s103 = sld [smem:[#allocation8 + $0x1]]
    %s104 = sld [smem:[#allocation8 + $0x2]]
    %s105 = sld [smem:[#allocation8 + $0x3]]
    %s106 = sld [smem:[#allocation8 + $0x4]]
    %s107 = sld [smem:[#allocation8 + $0x5]]
    %s108 = sld [smem:[#allocation8 + $0x6]]
    %s109 = sld [smem:[#allocation8 + $0x7]]
    %s110 = sld [smem:[#allocation8 + $0x8]]
    %s111 = sld [smem:[#allocation8 + $0x9]]
    %s112 = sld [smem:[#allocation9]]
    %s113 = sld [smem:[#allocation9 + $0x1]]
    %s114 = sld [smem:[#allocation9 + $0x2]]
    %s115 = sld [smem:[#allocation9 + $0x3]]
    %s116 = sld [smem:[#allocation9 + $0x4]]
    %s117 = sld [smem:[#allocation9 + $0x5]]
    %s118 = sld [smem:[#allocation9 + $0x6]]
    %s119 = sld [smem:[#allocation9 + $0x7]]
    %s120 = sld [smem:[#allocation9 + $0x8]]
    %s121 = sld [smem:[#allocation9 + $0x9]]
    %s122 = sld [smem:[#allocation11]]
    %s123 = sld [smem:[#allocation11 + $0x1]]
    %s124 = sld [smem:[#allocation11 + $0x2]]
    %s125 = sld [smem:[#allocation11 + $0x3]]
    %s126 = sld [smem:[#allocation11 + $0x4]]
    %s127 = sld [smem:[#allocation11 + $0x5]]
    %s128 = sld [smem:[#allocation11 + $0x6]]
    %s129 = sld [smem:[#allocation11 + $0x7]]
    %s130 = sld [smem:[#allocation11 + $0x8]]
    %s131 = sld [smem:[#allocation11 + $0x9]]
    %s132 = sld [smem:[#allocation11 + $0x80]]
    %s133 = sld [smem:[#allocation11 + $0x81]]
    %s134 = sld [smem:[#allocation11 + $0x82]]
    %s135 = sld [smem:[#allocation11 + $0x83]]
    %s136 = sld [smem:[#allocation11 + $0x84]]
    %s137 = sld [smem:[#allocation11 + $0x85]]
    %s138 = sld [smem:[#allocation11 + $0x86]]
    %s139 = sld [smem:[#allocation11 + $0x87]]
    %s140 = sld [smem:[#allocation11 + $0x88]]
    %s141 = sld [smem:[#allocation11 + $0x89]]
    %s142 = sld [smem:[#allocation11 + $0x100]]
    %s143 = sld [smem:[#allocation11 + $0x101]]
    %s144 = sld [smem:[#allocation11 + $0x102]]
    %s145 = sld [smem:[#allocation11 + $0x103]]
    %s146 = sld [smem:[#allocation11 + $0x104]]
    %s147 = sld [smem:[#allocation11 + $0x105]]
    %s148 = sld [smem:[#allocation11 + $0x106]]
    %s149 = sld [smem:[#allocation11 + $0x107]]
    %s150 = sld [smem:[#allocation11 + $0x108]]
    %s151 = sld [smem:[#allocation11 + $0x109]]
    %s152 = sld [smem:[#allocation11 + $0x180]]
    %s153 = sld [smem:[#allocation11 + $0x181]]
    %s154 = sld [smem:[#allocation11 + $0x182]]
    %s155 = sld [smem:[#allocation11 + $0x183]]
    %s156 = sld [smem:[#allocation11 + $0x184]]
    %s157 = sld [smem:[#allocation11 + $0x185]]
    %s158 = sld [smem:[#allocation11 + $0x186]]
    %s159 = sld [smem:[#allocation11 + $0x187]]
    %s160 = sld [smem:[#allocation11 + $0x188]]
    %s161 = sld [smem:[#allocation11 + $0x189]]
    %s162 = sld [smem:[#allocation11 + $0x200]]
    %s163 = sld [smem:[#allocation11 + $0x201]]
    %s164 = sld [smem:[#allocation11 + $0x202]]
    %s165 = sld [smem:[#allocation11 + $0x203]]
    %s166 = sld [smem:[#allocation11 + $0x204]]
    %s167 = sld [smem:[#allocation11 + $0x205]]
    %s168 = sld [smem:[#allocation11 + $0x206]]
    %s169 = sld [smem:[#allocation11 + $0x207]]
    %s170 = sld [smem:[#allocation11 + $0x208]]
    %s171 = sld [smem:[#allocation11 + $0x209]]
    %s172 = sld [smem:[#allocation11 + $0x280]]
    %s173 = sld [smem:[#allocation11 + $0x281]]
    %s174 = sld [smem:[#allocation11 + $0x282]]
    %s175 = sld [smem:[#allocation11 + $0x283]]
    %s176 = sld [smem:[#allocation11 + $0x284]]
    %s177 = sld [smem:[#allocation11 + $0x285]]
    %s178 = sld [smem:[#allocation11 + $0x286]]
    %s179 = sld [smem:[#allocation11 + $0x287]]
    %s180 = sld [smem:[#allocation11 + $0x288]]
    %s181 = sld [smem:[#allocation11 + $0x289]]
    %s182 = sld [smem:[#allocation11 + $0x300]]
    %s183 = sld [smem:[#allocation11 + $0x301]]
    %s184 = sld [smem:[#allocation11 + $0x302]]
    %s185 = sld [smem:[#allocation11 + $0x303]]
    %s186 = sld [smem:[#allocation11 + $0x304]]
    %s187 = sld [smem:[#allocation11 + $0x305]]
    %s188 = sld [smem:[#allocation11 + $0x306]]
    %s189 = sld [smem:[#allocation11 + $0x307]]
    %s190 = sld [smem:[#allocation11 + $0x308]]
    %s191 = sld [smem:[#allocation11 + $0x309]]
    %s192 = sld [smem:[#allocation11 + $0x380]]
    %s193 = sld [smem:[#allocation11 + $0x381]]
    %s194 = sld [smem:[#allocation11 + $0x382]]
    %s195 = sld [smem:[#allocation11 + $0x383]]
    %s196 = sld [smem:[#allocation11 + $0x384]]
    %s197 = sld [smem:[#allocation11 + $0x385]]
    %s198 = sld [smem:[#allocation11 + $0x386]]
    %s199 = sld [smem:[#allocation11 + $0x387]]
    %s200 = sld [smem:[#allocation11 + $0x388]]
    %s201 = sld [smem:[#allocation11 + $0x389]]
    %s202 = sld [smem:[#allocation11 + $0x400]]
    %s203 = sld [smem:[#allocation11 + $0x401]]
    %s204 = sld [smem:[#allocation11 + $0x402]]
    %s205 = sld [smem:[#allocation11 + $0x403]]
    %s206 = sld [smem:[#allocation11 + $0x404]]
    %s207 = sld [smem:[#allocation11 + $0x405]]
    %s208 = sld [smem:[#allocation11 + $0x406]]
    %s209 = sld [smem:[#allocation11 + $0x407]]
    %s210 = sld [smem:[#allocation11 + $0x408]]
    %s211 = sld [smem:[#allocation11 + $0x409]]
    %s212 = sld [smem:[#allocation11 + $0x480]]
    %s213 = sld [smem:[#allocation11 + $0x481]]
    %s214 = sld [smem:[#allocation11 + $0x482]]
    %s215 = sld [smem:[#allocation11 + $0x483]]
    %s216 = sld [smem:[#allocation11 + $0x484]]
    %s217 = sld [smem:[#allocation11 + $0x485]]
    %s218 = sld [smem:[#allocation11 + $0x486]]
    %s219 = sld [smem:[#allocation11 + $0x487]]
    %s220 = sld [smem:[#allocation11 + $0x488]]
    %s221 = sld [smem:[#allocation11 + $0x489]]
    %s222 = sld [smem:[#allocation12]]
    %s223 = sld [smem:[#allocation12 + $0x1]]
    %s224 = sld [smem:[#allocation12 + $0x2]]
    %s225 = sld [smem:[#allocation12 + $0x3]]
    %s226 = sld [smem:[#allocation12 + $0x4]]
    %s227 = sld [smem:[#allocation12 + $0x5]]
    %s228 = sld [smem:[#allocation12 + $0x6]]
    %s229 = sld [smem:[#allocation12 + $0x7]]
    %s230 = sld [smem:[#allocation12 + $0x8]]
    %s231 = sld [smem:[#allocation12 + $0x9]]
    %s232 = sld [smem:[#allocation13]]
    %s233 = sld [smem:[#allocation13 + $0x1]]
    %s234 = sld [smem:[#allocation13 + $0x2]]
    %s235 = sld [smem:[#allocation13 + $0x3]]
    %s236 = sld [smem:[#allocation13 + $0x4]]
    %s237 = sld [smem:[#allocation13 + $0x5]]
    %s238 = sld [smem:[#allocation13 + $0x6]]
    %s239 = sld [smem:[#allocation13 + $0x7]]
    %s240 = sld [smem:[#allocation13 + $0x8]]
    %s241 = sld [smem:[#allocation13 + $0x9]]
    %s242 = sld [smem:[#allocation2]]
    %v243 = vld [vmem:[#allocation3] sm:$0xff]
    %v244 = vld [vmem:[#allocation3 + $0x8] sm:$0xff]
    %v245 = vstv %s102
    %v246 = vmul.f32 %v243, %v245
    %v247 = vmul.f32 %v244, %v245
    %v248 = vstv %s112
    %v249 = vadd.f32 %v246, %v248
    %v250 = vadd.f32 %v247, %v248
    %v251 = vmax.f32 %v249, 0.0
    %v252 = vmax.f32 %v250, 0.0
    %v253 = vstv %s122
    %v254 = vmul.f32 %v251, %v253
    %v255 = vmul.f32 %v252, %v253
    %v256 = vstv %s123
    %v257 = vmul.f32 %v251, %v256
    %v258 = vmul.f32 %v252, %v256
    %v259 = vstv %s124
    %v260 = vmul.f32 %v251, %v259
    %v261 = vmul.f32 %v252, %v259
    %v262 = vstv %s125
    %v263 = vmul.f32 %v251, %v262
    %v264 = vmul.f32 %v252, %v262
    %v265 = vstv %s126
    %v266 = vmul.f32 %v251, %v265
    %v267 = vmul.f32 %v252, %v265
    %v268 = vstv %s127
    %v269 = vmul.f32 %v251, %v268
    %v270 = vmul.f32 %v252, %v268
    %v271 = vstv %s128
    %v272 = vmul.f32 %v251, %v271
    %v273 = vmul.f32 %v252, %v271
    %v274 = vstv %s129
    %v275 = vmul.f32 %v251, %v274
    %v276 = vmul.f32 %v252, %v274
    %v277 = vstv %s130
    %v278 = vmul.f32 %v251, %v277
    %v279 = vmul.f32 %v252, %v277
    %v280 = vstv %s131
    %v281 = vmul.f32 %v251, %v280
    %v282 = vmul.f32 %v252, %v280
    %v283 = vstv %s103
    %v284 = vmul.f32 %v243, %v283
    %v285 = vmul.f32 %v244, %v283
    %v286 = vstv %s113
    %v287 = vadd.f32 %v284, %v286
    %v288 = vadd.f32 %v285, %v286
    %v289 = vmax.f32 %v287, 0.0
    %v290 = vmax.f32 %v288, 0.0
    %v291 = vstv %s132
    %v292 = vmul.f32 %v289, %v291
    %v293 = vmul.f32 %v290, %v291
    %v294 = vadd.f32 %v254, %v292
    %v295 = vadd.f32 %v255, %v293
    %v296 = vstv %s133
    %v297 = vmul.f32 %v289, %v296
    %v298 = vmul.f32 %v290, %v296
    %v299 = vadd.f32 %v257, %v297
    %v300 = vadd.f32 %v258, %v298
    %v301 = vstv %s134
    %v302 = vmul.f32 %v289, %v301
    %v303 = vmul.f32 %v290, %v301
    %v304 = vadd.f32 %v260, %v302
    %v305 = vadd.f32 %v261, %v303
    %v306 = vstv %s135
    %v307 = vmul.f32 %v289, %v306
    %v308 = vmul.f32 %v290, %v306
    %v309 = vadd.f32 %v263, %v307
    %v310 = vadd.f32 %v264, %v308
    %v311 = vstv %s136
    %v312 = vmul.f32 %v289, %v311
    %v313 = vmul.f32 %v290, %v311
    %v314 = vadd.f32 %v266, %v312
    %v315 = vadd.f32 %v267, %v313
    %v316 = vstv %s137
    %v317 = vmul.f32 %v289, %v316
    %v318 = vmul.f32 %v290, %v316
    %v319 = vadd.f32 %v269, %v317
    %v320 = vadd.f32 %v270, %v318
    %v321 = vstv %s138
    %v322 = vmul.f32 %v289, %v321
    %v323 = vmul.f32 %v290, %v321
    %v324 = vadd.f32 %v272, %v322
    %v325 = vadd.f32 %v273, %v323
    %v326 = vstv %s139
    %v327 = vmul.f32 %v289, %v326
    %v328 = vmul.f32 %v290, %v326
    %v329 = vadd.f32 %v275, %v327
    %v330 = vadd.f32 %v276, %v328
    %v331 = vstv %s140
    %v332 = vmul.f32 %v289, %v331
    %v333 = vmul.f32 %v290, %v331
    %v334 = vadd.f32 %v278, %v332
    %v335 = vadd.f32 %v279, %v333
    %v336 = vstv %s141
    %v337 = vmul.f32 %v289, %v336
    %v338 = vmul.f32 %v290, %v336
    %v339 = vadd.f32 %v281, %v337
    %v340 = vadd.f32 %v282, %v338
    %v341 = vstv %s104
    %v342 = vmul.f32 %v243, %v341
    %v343 = vmul.f32 %v244, %v341
    %v344 = vstv %s114
    %v345 = vadd.f32 %v342, %v344
    %v346 = vadd.f32 %v343, %v344
    %v347 = vmax.f32 %v345, 0.0
    %v348 = vmax.f32 %v346, 0.0
    %v349 = vstv %s142
    %v350 = vmul.f32 %v347, %v349
    %v351 = vmul.f32 %v348, %v349
    %v352 = vadd.f32 %v294, %v350
    %v353 = vadd.f32 %v295, %v351
    %v354 = vstv %s143
    %v355 = vmul.f32 %v347, %v354
    %v356 = vmul.f32 %v348, %v354
    %v357 = vadd.f32 %v299, %v355
    %v358 = vadd.f32 %v300, %v356
    %v359 = vstv %s144
    %v360 = vmul.f32 %v347, %v359
    %v361 = vmul.f32 %v348, %v359
    %v362 = vadd.f32 %v304, %v360
    %v363 = vadd.f32 %v305, %v361
    %v364 = vstv %s145
    %v365 = vmul.f32 %v347, %v364
    %v366 = vmul.f32 %v348, %v364
    %v367 = vadd.f32 %v309, %v365
    %v368 = vadd.f32 %v310, %v366
    %v369 = vstv %s146
    %v370 = vmul.f32 %v347, %v369
    %v371 = vmul.f32 %v348, %v369
    %v372 = vadd.f32 %v314, %v370
    %v373 = vadd.f32 %v315, %v371
    %v374 = vstv %s147
    %v375 = vmul.f32 %v347, %v374
    %v376 = vmul.f32 %v348, %v374
    %v377 = vadd.f32 %v319, %v375
    %v378 = vadd.f32 %v320, %v376
    %v379 = vstv %s148
    %v380 = vmul.f32 %v347, %v379
    %v381 = vmul.f32 %v348, %v379
    %v382 = vadd.f32 %v324, %v380
    %v383 = vadd.f32 %v325, %v381
    %v384 = vstv %s149
    %v385 = vmul.f32 %v347, %v384
    %v386 = vmul.f32 %v348, %v384
    %v387 = vadd.f32 %v329, %v385
    %v388 = vadd.f32 %v330, %v386
    %v389 = vstv %s150
    %v390 = vmul.f32 %v347, %v389
    %v391 = vmul.f32 %v348, %v389
    %v392 = vadd.f32 %v334, %v390
    %v393 = vadd.f32 %v335, %v391
    %v394 = vstv %s151
    %v395 = vmul.f32 %v347, %v394
    %v396 = vmul.f32 %v348, %v394
    %v397 = vadd.f32 %v339, %v395
    %v398 = vadd.f32 %v340, %v396
    %v399 = vstv %s105
    %v400 = vmul.f32 %v243, %v399
    %v401 = vmul.f32 %v244, %v399
    %v402 = vstv %s115
    %v403 = vadd.f32 %v400, %v402
    %v404 = vadd.f32 %v401, %v402
    %v405 = vmax.f32 %v403, 0.0
    %v406 = vmax.f32 %v404, 0.0
    %v407 = vstv %s152
    %v408 = vmul.f32 %v405, %v407
    %v409 = vmul.f32 %v406, %v407
    %v410 = vadd.f32 %v352, %v408
    %v411 = vadd.f32 %v353, %v409
    %v412 = vstv %s153
    %v413 = vmul.f32 %v405, %v412
    %v414 = vmul.f32 %v406, %v412
    %v415 = vadd.f32 %v357, %v413
    %v416 = vadd.f32 %v358, %v414
    %v417 = vstv %s154
    %v418 = vmul.f32 %v405, %v417
    %v419 = vmul.f32 %v406, %v417
    %v420 = vadd.f32 %v362, %v418
    %v421 = vadd.f32 %v363, %v419
    %v422 = vstv %s155
    %v423 = vmul.f32 %v405, %v422
    %v424 = vmul.f32 %v406, %v422
    %v425 = vadd.f32 %v367, %v423
    %v426 = vadd.f32 %v368, %v424
    %v427 = vstv %s156
    %v428 = vmul.f32 %v405, %v427
    %v429 = vmul.f32 %v406, %v427
    %v430 = vadd.f32 %v372, %v428
    %v431 = vadd.f32 %v373, %v429
    %v432 = vstv %s157
    %v433 = vmul.f32 %v405, %v432
    %v434 = vmul.f32 %v406, %v432
    %v435 = vadd.f32 %v377, %v433
    %v436 = vadd.f32 %v378, %v434
    %v437 = vstv %s158
    %v438 = vmul.f32 %v405, %v437
    %v439 = vmul.f32 %v406, %v437
    %v440 = vadd.f32 %v382, %v438
    %v441 = vadd.f32 %v383, %v439
    %v442 = vstv %s159
    %v443 = vmul.f32 %v405, %v442
    %v444 = vmul.f32 %v406, %v442
    %v445 = vadd.f32 %v387, %v443
    %v446 = vadd.f32 %v388, %v444
    %v447 = vstv %s160
    %v448 = vmul.f32 %v405, %v447
    %v449 = vmul.f32 %v406, %v447
    %v450 = vadd.f32 %v392, %v448
    %v451 = vadd.f32 %v393, %v449
    %v452 = vstv %s161
    %v453 = vmul.f32 %v405, %v452
    %v454 = vmul.f32 %v406, %v452
    %v455 = vadd.f32 %v397, %v453
    %v456 = vadd.f32 %v398, %v454
    %v457 = vstv %s106
    %v458 = vmul.f32 %v243, %v457
    %v459 = vmul.f32 %v244, %v457
    %v460 = vstv %s116
    %v461 = vadd.f32 %v458, %v460
    %v462 = vadd.f32 %v459, %v460
    %v463 = vmax.f32 %v461, 0.0
    %v464 = vmax.f32 %v462, 0.0
    %v465 = vstv %s162
    %v466 = vmul.f32 %v463, %v465
    %v467 = vmul.f32 %v464, %v465
    %v468 = vadd.f32 %v410, %v466
    %v469 = vadd.f32 %v411, %v467
    %v470 = vstv %s163
    %v471 = vmul.f32 %v463, %v470
    %v472 = vmul.f32 %v464, %v470
    %v473 = vadd.f32 %v415, %v471
    %v474 = vadd.f32 %v416, %v472
    %v475 = vstv %s164
    %v476 = vmul.f32 %v463, %v475
    %v477 = vmul.f32 %v464, %v475
    %v478 = vadd.f32 %v420, %v476
    %v479 = vadd.f32 %v421, %v477
    %v480 = vstv %s165
    %v481 = vmul.f32 %v463, %v480
    %v482 = vmul.f32 %v464, %v480
    %v483 = vadd.f32 %v425, %v481
    %v484 = vadd.f32 %v426, %v482
    %v485 = vstv %s166
    %v486 = vmul.f32 %v463, %v485
    %v487 = vmul.f32 %v464, %v485
    %v488 = vadd.f32 %v430, %v486
    %v489 = vadd.f32 %v431, %v487
    %v490 = vstv %s167
    %v491 = vmul.f32 %v463, %v490
    %v492 = vmul.f32 %v464, %v490
    %v493 = vadd.f32 %v435, %v491
    %v494 = vadd.f32 %v436, %v492
    %v495 = vstv %s168
    %v496 = vmul.f32 %v463, %v495
    %v497 = vmul.f32 %v464, %v495
    %v498 = vadd.f32 %v440, %v496
    %v499 = vadd.f32 %v441, %v497
    %v500 = vstv %s169
    %v501 = vmul.f32 %v463, %v500
    %v502 = vmul.f32 %v464, %v500
    %v503 = vadd.f32 %v445, %v501
    %v504 = vadd.f32 %v446, %v502
    %v505 = vstv %s170
    %v506 = vmul.f32 %v463, %v505
    %v507 = vmul.f32 %v464, %v505
    %v508 = vadd.f32 %v450, %v506
    %v509 = vadd.f32 %v451, %v507
    %v510 = vstv %s171
    %v511 = vmul.f32 %v463, %v510
    %v512 = vmul.f32 %v464, %v510
    %v513 = vadd.f32 %v455, %v511
    %v514 = vadd.f32 %v456, %v512
    %v515 = vstv %s107
    %v516 = vmul.f32 %v243, %v515
    %v517 = vmul.f32 %v244, %v515
    %v518 = vstv %s117
    %v519 = vadd.f32 %v516, %v518
    %v520 = vadd.f32 %v517, %v518
    %v521 = vmax.f32 %v519, 0.0
    %v522 = vmax.f32 %v520, 0.0
    %v523 = vstv %s172
    %v524 = vmul.f32 %v521, %v523
    %v525 = vmul.f32 %v522, %v523
    %v526 = vadd.f32 %v468, %v524
    %v527 = vadd.f32 %v469, %v525
    %v528 = vstv %s173
    %v529 = vmul.f32 %v521, %v528
    %v530 = vmul.f32 %v522, %v528
    %v531 = vadd.f32 %v473, %v529
    %v532 = vadd.f32 %v474, %v530
    %v533 = vstv %s174
    %v534 = vmul.f32 %v521, %v533
    %v535 = vmul.f32 %v522, %v533
    %v536 = vadd.f32 %v478, %v534
    %v537 = vadd.f32 %v479, %v535
    %v538 = vstv %s175
    %v539 = vmul.f32 %v521, %v538
    %v540 = vmul.f32 %v522, %v538
    %v541 = vadd.f32 %v483, %v539
    %v542 = vadd.f32 %v484, %v540
    %v543 = vstv %s176
    %v544 = vmul.f32 %v521, %v543
    %v545 = vmul.f32 %v522, %v543
    %v546 = vadd.f32 %v488, %v544
    %v547 = vadd.f32 %v489, %v545
    %v548 = vstv %s177
    %v549 = vmul.f32 %v521, %v548
    %v550 = vmul.f32 %v522, %v548
    %v551 = vadd.f32 %v493, %v549
    %v552 = vadd.f32 %v494, %v550
    %v553 = vstv %s178
    %v554 = vmul.f32 %v521, %v553
    %v555 = vmul.f32 %v522, %v553
    %v556 = vadd.f32 %v498, %v554
    %v557 = vadd.f32 %v499, %v555
    %v558 = vstv %s179
    %v559 = vmul.f32 %v521, %v558
    %v560 = vmul.f32 %v522, %v558
    %v561 = vadd.f32 %v503, %v559
    %v562 = vadd.f32 %v504, %v560
    %v563 = vstv %s180
    %v564 = vmul.f32 %v521, %v563
    %v565 = vmul.f32 %v522, %v563
    %v566 = vadd.f32 %v508, %v564
    %v567 = vadd.f32 %v509, %v565
    %v568 = vstv %s181
    %v569 = vmul.f32 %v521, %v568
    %v570 = vmul.f32 %v522, %v568
    %v571 = vadd.f32 %v513, %v569
    %v572 = vadd.f32 %v514, %v570
    %v573 = vstv %s108
    %v574 = vmul.f32 %v243, %v573
    %v575 = vmul.f32 %v244, %v573
    %v576 = vstv %s118
    %v577 = vadd.f32 %v574, %v576
    %v578 = vadd.f32 %v575, %v576
    %v579 = vmax.f32 %v577, 0.0
    %v580 = vmax.f32 %v578, 0.0
    %v581 = vstv %s182
    %v582 = vmul.f32 %v579, %v581
    %v583 = vmul.f32 %v580, %v581
    %v584 = vadd.f32 %v526, %v582
    %v585 = vadd.f32 %v527, %v583
    %v586 = vstv %s183
    %v587 = vmul.f32 %v579, %v586
    %v588 = vmul.f32 %v580, %v586
    %v589 = vadd.f32 %v531, %v587
    %v590 = vadd.f32 %v532, %v588
    %v591 = vstv %s184
    %v592 = vmul.f32 %v579, %v591
    %v593 = vmul.f32 %v580, %v591
    %v594 = vadd.f32 %v536, %v592
    %v595 = vadd.f32 %v537, %v593
    %v596 = vstv %s185
    %v597 = vmul.f32 %v579, %v596
    %v598 = vmul.f32 %v580, %v596
    %v599 = vadd.f32 %v541, %v597
    %v600 = vadd.f32 %v542, %v598
    %v601 = vstv %s186
    %v602 = vmul.f32 %v579, %v601
    %v603 = vmul.f32 %v580, %v601
    %v604 = vadd.f32 %v546, %v602
    %v605 = vadd.f32 %v547, %v603
    %v606 = vstv %s187
    %v607 = vmul.f32 %v579, %v606
    %v608 = vmul.f32 %v580, %v606
    %v609 = vadd.f32 %v551, %v607
    %v610 = vadd.f32 %v552, %v608
    %v611 = vstv %s188
    %v612 = vmul.f32 %v579, %v611
    %v613 = vmul.f32 %v580, %v611
    %v614 = vadd.f32 %v556, %v612
    %v615 = vadd.f32 %v557, %v613
    %v616 = vstv %s189
    %v617 = vmul.f32 %v579, %v616
    %v618 = vmul.f32 %v580, %v616
    %v619 = vadd.f32 %v561, %v617
    %v620 = vadd.f32 %v562, %v618
    %v621 = vstv %s190
    %v622 = vmul.f32 %v579, %v621
    %v623 = vmul.f32 %v580, %v621
    %v624 = vadd.f32 %v566, %v622
    %v625 = vadd.f32 %v567, %v623
    %v626 = vstv %s191
    %v627 = vmul.f32 %v579, %v626
    %v628 = vmul.f32 %v580, %v626
    %v629 = vadd.f32 %v571, %v627
    %v630 = vadd.f32 %v572, %v628
    %v631 = vstv %s109
    %v632 = vmul.f32 %v243, %v631
    %v633 = vmul.f32 %v244, %v631
    %v634 = vstv %s119
    %v635 = vadd.f32 %v632, %v634
    %v636 = vadd.f32 %v633, %v634
    %v637 = vmax.f32 %v635, 0.0
    %v638 = vmax.f32 %v636, 0.0
    %v639 = vstv %s192
    %v640 = vmul.f32 %v637, %v639
    %v641 = vmul.f32 %v638, %v639
    %v642 = vadd.f32 %v584, %v640
    %v643 = vadd.f32 %v585, %v641
    %v644 = vstv %s193
    %v645 = vmul.f32 %v637, %v644
    %v646 = vmul.f32 %v638, %v644
    %v647 = vadd.f32 %v589, %v645
    %v648 = vadd.f32 %v590, %v646
    %v649 = vstv %s194
    %v650 = vmul.f32 %v637, %v649
    %v651 = vmul.f32 %v638, %v649
    %v652 = vadd.f32 %v594, %v650
    %v653 = vadd.f32 %v595, %v651
    %v654 = vstv %s195
    %v655 = vmul.f32 %v637, %v654
    %v656 = vmul.f32 %v638, %v654
    %v657 = vadd.f32 %v599, %v655
    %v658 = vadd.f32 %v600, %v656
    %v659 = vstv %s196
    %v660 = vmul.f32 %v637, %v659
    %v661 = vmul.f32 %v638, %v659
    %v662 = vadd.f32 %v604, %v660
    %v663 = vadd.f32 %v605, %v661
    %v664 = vstv %s197
    %v665 = vmul.f32 %v637, %v664
    %v666 = vmul.f32 %v638, %v664
    %v667 = vadd.f32 %v609, %v665
    %v668 = vadd.f32 %v610, %v666
    %v669 = vstv %s198
    %v670 = vmul.f32 %v637, %v669
    %v671 = vmul.f32 %v638, %v669
    %v672 = vadd.f32 %v614, %v670
    %v673 = vadd.f32 %v615, %v671
    %v674 = vstv %s199
    %v675 = vmul.f32 %v637, %v674
    %v676 = vmul.f32 %v638, %v674
    %v677 = vadd.f32 %v619, %v675
    %v678 = vadd.f32 %v620, %v676
    %v679 = vstv %s200
    %v680 = vmul.f32 %v637, %v679
    %v681 = vmul.f32 %v638, %v679
    %v682 = vadd.f32 %v624, %v680
    %v683 = vadd.f32 %v625, %v681
    %v684 = vstv %s201
    %v685 = vmul.f32 %v637, %v684
    %v686 = vmul.f32 %v638, %v684
    %v687 = vadd.f32 %v629, %v685
    %v688 = vadd.f32 %v630, %v686
    %v689 = vstv %s110
    %v690 = vmul.f32 %v243, %v689
    %v691 = vmul.f32 %v244, %v689
    %v692 = vstv %s120
    %v693 = vadd.f32 %v690, %v692
    %v694 = vadd.f32 %v691, %v692
    %v695 = vmax.f32 %v693, 0.0
    %v696 = vmax.f32 %v694, 0.0
    %v697 = vstv %s202
    %v698 = vmul.f32 %v695, %v697
    %v699 = vmul.f32 %v696, %v697
    %v700 = vadd.f32 %v642, %v698
    %v701 = vadd.f32 %v643, %v699
    %v702 = vstv %s203
    %v703 = vmul.f32 %v695, %v702
    %v704 = vmul.f32 %v696, %v702
    %v705 = vadd.f32 %v647, %v703
    %v706 = vadd.f32 %v648, %v704
    %v707 = vstv %s204
    %v708 = vmul.f32 %v695, %v707
    %v709 = vmul.f32 %v696, %v707
    %v710 = vadd.f32 %v652, %v708
    %v711 = vadd.f32 %v653, %v709
    %v712 = vstv %s205
    %v713 = vmul.f32 %v695, %v712
    %v714 = vmul.f32 %v696, %v712
    %v715 = vadd.f32 %v657, %v713
    %v716 = vadd.f32 %v658, %v714
    %v717 = vstv %s206
    %v718 = vmul.f32 %v695, %v717
    %v719 = vmul.f32 %v696, %v717
    %v720 = vadd.f32 %v662, %v718
    %v721 = vadd.f32 %v663, %v719
    %v722 = vstv %s207
    %v723 = vmul.f32 %v695, %v722
    %v724 = vmul.f32 %v696, %v722
    %v725 = vadd.f32 %v667, %v723
    %v726 = vadd.f32 %v668, %v724
    %v727 = vstv %s208
    %v728 = vmul.f32 %v695, %v727
    %v729 = vmul.f32 %v696, %v727
    %v730 = vadd.f32 %v672, %v728
    %v731 = vadd.f32 %v673, %v729
    %v732 = vstv %s209
    %v733 = vmul.f32 %v695, %v732
    %v734 = vmul.f32 %v696, %v732
    %v735 = vadd.f32 %v677, %v733
    %v736 = vadd.f32 %v678, %v734
    %v737 = vstv %s210
    %v738 = vmul.f32 %v695, %v737
    %v739 = vmul.f32 %v696, %v737
    %v740 = vadd.f32 %v682, %v738
    %v741 = vadd.f32 %v683, %v739
    %v742 = vstv %s211
    %v743 = vmul.f32 %v695, %v742
    %v744 = vmul.f32 %v696, %v742
    %v745 = vadd.f32 %v687, %v743
    %v746 = vadd.f32 %v688, %v744
    %v747 = vstv %s111
    %v748 = vmul.f32 %v243, %v747
    %v749 = vmul.f32 %v244, %v747
    %v750 = vstv %s121
    %v751 = vadd.f32 %v748, %v750
    %v752 = vadd.f32 %v749, %v750
    %v753 = vmax.f32 %v751, 0.0
    %v754 = vmax.f32 %v752, 0.0
    %v755 = vstv %s212
    %v756 = vmul.f32 %v753, %v755
    %v757 = vmul.f32 %v754, %v755
    %v758 = vadd.f32 %v700, %v756
    %v759 = vadd.f32 %v701, %v757
    %v760 = vstv %s213
    %v761 = vmul.f32 %v753, %v760
    %v762 = vmul.f32 %v754, %v760
    %v763 = vadd.f32 %v705, %v761
    %v764 = vadd.f32 %v706, %v762
    %v765 = vstv %s214
    %v766 = vmul.f32 %v753, %v765
    %v767 = vmul.f32 %v754, %v765
    %v768 = vadd.f32 %v710, %v766
    %v769 = vadd.f32 %v711, %v767
    %v770 = vstv %s215
    %v771 = vmul.f32 %v753, %v770
    %v772 = vmul.f32 %v754, %v770
    %v773 = vadd.f32 %v715, %v771
    %v774 = vadd.f32 %v716, %v772
    %v775 = vstv %s216
    %v776 = vmul.f32 %v753, %v775
    %v777 = vmul.f32 %v754, %v775
    %v778 = vadd.f32 %v720, %v776
    %v779 = vadd.f32 %v721, %v777
    %v780 = vstv %s217
    %v781 = vmul.f32 %v753, %v780
    %v782 = vmul.f32 %v754, %v780
    %v783 = vadd.f32 %v725, %v781
    %v784 = vadd.f32 %v726, %v782
    %v785 = vstv %s218
    %v786 = vmul.f32 %v753, %v785
    %v787 = vmul.f32 %v754, %v785
    %v788 = vadd.f32 %v730, %v786
    %v789 = vadd.f32 %v731, %v787
    %v790 = vstv %s219
    %v791 = vmul.f32 %v753, %v790
    %v792 = vmul.f32 %v754, %v790
    %v793 = vadd.f32 %v735, %v791
    %v794 = vadd.f32 %v736, %v792
    %v795 = vstv %s220
    %v796 = vmul.f32 %v753, %v795
    %v797 = vmul.f32 %v754, %v795
    %v798 = vadd.f32 %v740, %v796
    %v799 = vadd.f32 %v741, %v797
    %v800 = vstv %s221
    %v801 = vmul.f32 %v753, %v800
    %v802 = vmul.f32 %v754, %v800
    %v803 = vadd.f32 %v745, %v801
    %v804 = vadd.f32 %v746, %v802
    %v805 = vstv %s222
    %v806 = vadd.f32 %v758, %v805
    %v807 = vadd.f32 %v759, %v805
    %v808 = vmax.f32 %v806, 0.0
    %v809 = vmax.f32 %v807, 0.0
    %v810 = vstv %s232
    %v811 = vmul.f32 %v808, %v810
    %v812 = vmul.f32 %v809, %v810
    %v813 = vstv %s223
    %v814 = vadd.f32 %v763, %v813
    %v815 = vadd.f32 %v764, %v813
    %v816 = vmax.f32 %v814, 0.0
    %v817 = vmax.f32 %v815, 0.0
    %v818 = vstv %s233
    %v819 = vmul.f32 %v816, %v818
    %v820 = vmul.f32 %v817, %v818
    %v821 = vadd.f32 %v811, %v819
    %v822 = vadd.f32 %v812, %v820
    %v823 = vstv %s224
    %v824 = vadd.f32 %v768, %v823
    %v825 = vadd.f32 %v769, %v823
    %v826 = vmax.f32 %v824, 0.0
    %v827 = vmax.f32 %v825, 0.0
    %v828 = vstv %s234
    %v829 = vmul.f32 %v826, %v828
    %v830 = vmul.f32 %v827, %v828
    %v831 = vadd.f32 %v821, %v829
    %v832 = vadd.f32 %v822, %v830
    %v833 = vstv %s225
    %v834 = vadd.f32 %v773, %v833
    %v835 = vadd.f32 %v774, %v833
    %v836 = vmax.f32 %v834, 0.0
    %v837 = vmax.f32 %v835, 0.0
    %v838 = vstv %s235
    %v839 = vmul.f32 %v836, %v838
    %v840 = vmul.f32 %v837, %v838
    %v841 = vadd.f32 %v831, %v839
    %v842 = vadd.f32 %v832, %v840
    %v843 = vstv %s226
    %v844 = vadd.f32 %v778, %v843
    %v845 = vadd.f32 %v779, %v843
    %v846 = vmax.f32 %v844, 0.0
    %v847 = vmax.f32 %v845, 0.0
    %v848 = vstv %s236
    %v849 = vmul.f32 %v846, %v848
    %v850 = vmul.f32 %v847, %v848
    %v851 = vadd.f32 %v841, %v849
    %v852 = vadd.f32 %v842, %v850
    %v853 = vstv %s227
    %v854 = vadd.f32 %v783, %v853
    %v855 = vadd.f32 %v784, %v853
    %v856 = vmax.f32 %v854, 0.0
    %v857 = vmax.f32 %v855, 0.0
    %v858 = vstv %s237
    %v859 = vmul.f32 %v856, %v858
    %v860 = vmul.f32 %v857, %v858
    %v861 = vadd.f32 %v851, %v859
    %v862 = vadd.f32 %v852, %v860
    %v863 = vstv %s228
    %v864 = vadd.f32 %v788, %v863
    %v865 = vadd.f32 %v789, %v863
    %v866 = vmax.f32 %v864, 0.0
    %v867 = vmax.f32 %v865, 0.0
    %v868 = vstv %s238
    %v869 = vmul.f32 %v866, %v868
    %v870 = vmul.f32 %v867, %v868
    %v871 = vadd.f32 %v861, %v869
    %v872 = vadd.f32 %v862, %v870
    %v873 = vstv %s229
    %v874 = vadd.f32 %v793, %v873
    %v875 = vadd.f32 %v794, %v873
    %v876 = vmax.f32 %v874, 0.0
    %v877 = vmax.f32 %v875, 0.0
    %v878 = vstv %s239
    %v879 = vmul.f32 %v876, %v878
    %v880 = vmul.f32 %v877, %v878
    %v881 = vadd.f32 %v871, %v879
    %v882 = vadd.f32 %v872, %v880
    %v883 = vstv %s230
    %v884 = vadd.f32 %v798, %v883
    %v885 = vadd.f32 %v799, %v883
    %v886 = vmax.f32 %v884, 0.0
    %v887 = vmax.f32 %v885, 0.0
    %v888 = vstv %s240
    %v889 = vmul.f32 %v886, %v888
    %v890 = vmul.f32 %v887, %v888
    %v891 = vadd.f32 %v881, %v889
    %v892 = vadd.f32 %v882, %v890
    %v893 = vstv %s231
    %v894 = vadd.f32 %v803, %v893
    %v895 = vadd.f32 %v804, %v893
    %v896 = vmax.f32 %v894, 0.0
    %v897 = vmax.f32 %v895, 0.0
    %v898 = vstv %s241
    %v899 = vmul.f32 %v896, %v898
    %v900 = vmul.f32 %v897, %v898
    %v901 = vadd.f32 %v891, %v899
    %v902 = vadd.f32 %v892, %v900
    %v903 = vstv %s242
    %v904 = vadd.f32 %v901, %v903
    %v905 = vadd.f32 %v902, %v903
    %906 = vst [vmem:[#allocation15] sm:$0xff] %v904
    %907 = vst [vmem:[#allocation15 + $0x8] sm:$0xff] %v905
    // Predicated region
    $region54: #{tpu_custom_call.1} parent=1 // pred_check
      _
    $region55: #{tpu_custom_call.1} parent=1 // pred_check_branch
      %909 = sbr.rel (0) target = $region57
    $region56: #{tpu_custom_call.1} parent=1 // pred_region
      %s911 = ssub.s32 256, 256
      %912 = vsyncadd [#allocation5], %s911
      %s913 = sshll.u32 [#allocation15], 4
      %s914 = int_to_ptr.vmem [resolvable:$true] %s913
      %919 = dma.vmem_to_hbm [thread:$0]  %s914, 256, %s7, [#allocation5], 128, 128, 8
    $region57: #{tpu_custom_call.1} parent=1 // pred_fallthru
      _
    // Predicated region
    $region58: #{tpu_custom_call.1} parent=1 // pred_check
      _
    $region59: #{tpu_custom_call.1} parent=1 // pred_check_branch
      %921 = sbr.rel (0) target = $region61
    $region60: #{tpu_custom_call.1} parent=1 // pred_region
      %922 = dma.done [#allocation5], 256
    $region61: #{tpu_custom_call.1} parent=1 // pred_fallthru
      _
    %923 = vsyncpa [#allocation4], 1
    %924 = vsyncpa [#allocation5], 1
    %925 = vsyncpa [#allocation6], 1
    %926 = vsyncpa [#allocation7], 1
    %927 = vsyncpa [#allocation10], 1
    %928 = vsyncpa [#allocation14], 1

</llo_original>
